<compile_context>
chip_gen: v5e
topology: v5e:2x2
jax: 0.10.0
libtpu: 0.0.40
codegen_flags: <defaults>
</compile_context>

<pallas_src>
import functools

import jax
import jax.numpy as jnp
from jax.experimental import pallas as pl
from jax.experimental.pallas import tpu as pltpu


def _lstm_activate(gates, c, H):
    """LSTM nonlinearities on a (B, 4H) gate row with columns ordered [i,f,o,g].

    sigmoid lowered as 0.5*(tanh(x/2)+1) over the first 3H lanes (one EUP
    pass) and tanh over the last H lanes only.
    """
    sg = 0.5 * (jnp.tanh(gates[:, :3 * H] * 0.5) + 1.0)   # [i | f | o]
    g = jnp.tanh(gates[:, 3 * H:])                        # [g]
    i = sg[:, 0 * H:1 * H]
    f = sg[:, 1 * H:2 * H]
    o = sg[:, 2 * H:3 * H]
    c_new = f * c + i * g
    h_new = o * jnp.tanh(c_new)
    return h_new, c_new


def _lstm_model_kernel(x_ref,                          # (T*B, F)  time-major rows
                       wih0_ref, whh0_ref, b0_ref,     # (F,4H), (H,4H), (1,4H)
                       wih1_ref, whh1_ref, b1_ref,     # (H,4H), (H,4H), (1,4H)
                       wfc1_ref, bfc1_ref,             # (H, H//2), (1, H//2)
                       wfc2_ref, bfc2_ref,             # (H//2, O), (1, O)
                       out_ref,                        # (B, O)
                       *, hidden, seq_len, batch):
    H, T, B = hidden, seq_len, batch

    # Hoisted layer-0 input projection: all timesteps in one MXU matmul, with
    # the folded bias added once (no per-iteration broadcast).
    xg_all = (jnp.dot(x_ref[...], wih0_ref[...],
                      preferred_element_type=jnp.float32)
              + b0_ref[...])                                        # (T*B, 4H)

    # Loop-invariant operands hoisted once (small: ~12 vregs total).
    whh0 = whh0_ref[...]                                            # (H, 4H)
    wih1 = wih1_ref[...]                                            # (H, 4H)
    whh1 = whh1_ref[...]                                            # (H, 4H)
    b1 = jnp.broadcast_to(b1_ref[...], (B, 4 * H))                  # (B, 4H)

    zeros = jnp.zeros((B, H), jnp.float32)
    h1, c1, h2, c2 = zeros, zeros, zeros, zeros

    # Fully unrolled static recurrence (T tiny & static) so the scheduler can
    # interleave layer-1 of step t with layer-0 of step t+1.
    # TODO(synk): at production T/B/H, make the recurrent matmuls
    # weight-stationary with explicit MXU driving (pltpu.matmul_push_rhs once
    # per weight, matmul_acc_lhs per step, MRB in-place accumulate on v7x) and
    # stream xg_all over a T grid; unnecessary and unverifiable at toy sizes.
    for t in range(T):
        # layer 0: only the recurrent matmul remains on the serial path.
        g0 = xg_all[t * B:(t + 1) * B, :] + jnp.dot(
            h1, whh0, preferred_element_type=jnp.float32)
        h1, c1 = _lstm_activate(g0, c1, H)

        # layer 1: two accumulating matmuls replace the lane concat; the
        # h2-dependent half (pre1) does not wait on h1(t).
        pre1 = jnp.dot(h2, whh1, preferred_element_type=jnp.float32) + b1
        g1 = jnp.dot(h1, wih1, preferred_element_type=jnp.float32) + pre1
        h2, c2 = _lstm_activate(g1, c2, H)

    # fc1 -> fc2 on the last-timestep hidden state of the top layer.
    mid = (jnp.dot(h2, wfc1_ref[...], preferred_element_type=jnp.float32)
           + bfc1_ref[...])
    out = (jnp.dot(mid, wfc2_ref[...], preferred_element_type=jnp.float32)
           + bfc2_ref[...])
    out_ref[...] = out.astype(out_ref.dtype)


def init_params(key, in_features, hidden_units, out_features):
    """Deterministic init, PyTorch-style uniform(-1/sqrt(H), 1/sqrt(H))."""
    H, F, O = hidden_units, in_features, out_features
    k = 1.0 / jnp.sqrt(jnp.float32(H))
    names_shapes = [
        ("w_ih_l0", (4 * H, F)), ("w_hh_l0", (4 * H, H)),
        ("b_ih_l0", (4 * H,)),   ("b_hh_l0", (4 * H,)),
        ("w_ih_l1", (4 * H, H)), ("w_hh_l1", (4 * H, H)),
        ("b_ih_l1", (4 * H,)),   ("b_hh_l1", (4 * H,)),
        ("w_fc1", (H // 2, H)),  ("b_fc1", (H // 2,)),
        ("w_fc2", (O, H // 2)),  ("b_fc2", (O,)),
    ]
    keys = jax.random.split(key, len(names_shapes))
    params = {}
    for (name, shape), kk in zip(names_shapes, keys):
        params[name] = jax.random.uniform(kk, shape, jnp.float32, -k, k)
    return params


def lstm_model_forward(x, params, hidden_units, out_features):
    """x: (B, T, F) float32, batch_first (PyTorch convention)."""
    B, T, F = x.shape
    H, O = hidden_units, out_features
    M = H // 2

    # Gate-column permutation: PyTorch order [i, f, g, o] -> kernel order
    # [i, f, o, g] so all sigmoid lanes are contiguous (EUP savings in-kernel).
    perm = jnp.concatenate([jnp.arange(0, H), jnp.arange(H, 2 * H),
                            jnp.arange(3 * H, 4 * H), jnp.arange(2 * H, 3 * H)])

    # time-major, flattened rows so the kernel can do one batched projection.
    x2d = jnp.transpose(x, (1, 0, 2)).reshape(T * B, F).astype(jnp.float32)

    # pre-transpose weights to (in, out); reorder gate columns; fold bias pairs.
    wih0 = params["w_ih_l0"].T[:, perm]                             # (F, 4H)
    whh0 = params["w_hh_l0"].T[:, perm]                             # (H, 4H)
    b0 = (params["b_ih_l0"] + params["b_hh_l0"])[perm].reshape(1, 4 * H)
    wih1 = params["w_ih_l1"].T[:, perm]                             # (H, 4H)
    whh1 = params["w_hh_l1"].T[:, perm]                             # (H, 4H)
    b1 = (params["b_ih_l1"] + params["b_hh_l1"])[perm].reshape(1, 4 * H)
    wfc1 = params["w_fc1"].T                                        # (H, M)
    bfc1 = params["b_fc1"].reshape(1, M)
    wfc2 = params["w_fc2"].T                                        # (M, O)
    bfc2 = params["b_fc2"].reshape(1, O)
    # TODO(synk): on v6e/v7x cast the stationary weights to bf16 (single-pass
    # MXU) once strict f32 1e-4 parity against the f32 reference is relaxed.

    operands = (x2d, wih0, whh0, b0, wih1, whh1, b1, wfc1, bfc1, wfc2, bfc2)

    kernel = functools.partial(_lstm_model_kernel, hidden=H, seq_len=T, batch=B)

    # advisory cost estimate so XLA schedules surrounding ops sensibly
    flops = (2 * T * B * F * 4 * H                 # hoisted input projection
             + T * 3 * (2 * B * H * 4 * H)         # 3 recurrent matmuls / step
             + 2 * B * H * M + 2 * B * M * O)      # fc1, fc2
    transcendentals = T * 2 * B * 5 * H            # 3H + H + H tanh lanes / cell
    bytes_accessed = int(sum(op.size for op in operands) * 4 + B * O * 4)

    vmem_spec = pl.BlockSpec(memory_space=pltpu.MemorySpace.VMEM)
    return pl.pallas_call(
        kernel,
        out_shape=jax.ShapeDtypeStruct((B, O), jnp.float32),
        in_specs=[vmem_spec] * len(operands),
        out_specs=vmem_spec,
        cost_estimate=pl.CostEstimate(flops=flops,
                                      transcendentals=transcendentals,
                                      bytes_accessed=bytes_accessed),
    )(*operands)
    # TODO(synk): for non-toy batch on v7x, split B across the two TensorCores
    # with grid=(2,) and dimension_semantics=("parallel",); at B=2 the fixed
    # per-grid-step overhead (~0.35 us) would exceed the whole kernel runtime,
    # so grid=() is kept deliberately.


def _reference_forward(x, params, hidden_units, out_features):
    """Pure-JAX reference mirroring torch.nn.LSTM (2 layers) + fc1 + fc2."""
    B, T, F = x.shape
    H = hidden_units

    def cell(x_t, h, c, w_ih, w_hh, b_ih, b_hh):
        g = x_t @ w_ih.T + b_ih + h @ w_hh.T + b_hh
        i = jax.nn.sigmoid(g[:, 0 * H:1 * H])
        f = jax.nn.sigmoid(g[:, 1 * H:2 * H])
        gg = jnp.tanh(g[:, 2 * H:3 * H])
        o = jax.nn.sigmoid(g[:, 3 * H:4 * H])
        c = f * c + i * gg
        return o * jnp.tanh(c), c

    h1 = c1 = h2 = c2 = jnp.zeros((B, H), jnp.float32)
    for t in range(T):
        h1, c1 = cell(x[:, t, :], h1, c1, params["w_ih_l0"], params["w_hh_l0"],
                      params["b_ih_l0"], params["b_hh_l0"])
        h2, c2 = cell(h1, h2, c2, params["w_ih_l1"], params["w_hh_l1"],
                      params["b_ih_l1"], params["b_hh_l1"])
    mid = h2 @ params["w_fc1"].T + params["b_fc1"]
    return mid @ params["w_fc2"].T + params["b_fc2"]


if __name__ == "__main__":
    B, T, F, H, O = 2, 8, 4, 32, 1

    key = jax.random.PRNGKey(0)
    kx, kp = jax.random.split(key)
    x = jax.random.normal(kx, (B, T, F), jnp.float32)
    params = init_params(kp, F, H, O)

    out = lstm_model_forward(x, params, H, O)
    out = jax.block_until_ready(out)

    ref = _reference_forward(x, params, H, O)
    assert out.shape == (B, O)
    assert jnp.allclose(out, ref, atol=1e-4, rtol=1e-4), (out, ref)

    print("KERNEL_OK")
</pallas_src>

<mosaic_0001>
module attributes {stable_mosaic.version = 11 : i64} {
  func.func @_lstm_model_kernel(%arg0: memref<16x4xf32, #tpu.memory_space<vmem>>, %arg1: memref<4x128xf32, #tpu.memory_space<vmem>>, %arg2: memref<32x128xf32, #tpu.memory_space<vmem>>, %arg3: memref<1x128xf32, #tpu.memory_space<vmem>>, %arg4: memref<32x128xf32, #tpu.memory_space<vmem>>, %arg5: memref<32x128xf32, #tpu.memory_space<vmem>>, %arg6: memref<1x128xf32, #tpu.memory_space<vmem>>, %arg7: memref<32x16xf32, #tpu.memory_space<vmem>>, %arg8: memref<1x16xf32, #tpu.memory_space<vmem>>, %arg9: memref<16x1xf32, #tpu.memory_space<vmem>>, %arg10: memref<1x1xf32, #tpu.memory_space<vmem>>, %arg11: memref<2x1xf32, #tpu.memory_space<vmem>>) attributes {dimension_semantics = [], scalar_prefetch = 0 : i64, scratch_operands = 0 : i64, tpu.core_type = #tpu.core_type<tc>} {
    %c0 = arith.constant 0 : index
    %c0_0 = arith.constant 0 : index
    %0 = vector.load %arg0[%c0, %c0_0] : memref<16x4xf32, #tpu.memory_space<vmem>>, vector<16x4xf32>
    %c0_1 = arith.constant 0 : index
    %c0_2 = arith.constant 0 : index
    %1 = vector.load %arg1[%c0_1, %c0_2] : memref<4x128xf32, #tpu.memory_space<vmem>>, vector<4x128xf32>
    %cst = arith.constant dense<0.000000e+00> : vector<16x128xf32>
    %2 = tpu.matmul %0, %1, %cst {dimension_numbers = #tpu.dot_dimension_numbers<[1], [0], [0], [1], [0, 0, 1, 1], [], []>} : vector<16x4xf32>, vector<4x128xf32>, vector<16x128xf32> -> vector<16x128xf32>
    %c0_3 = arith.constant 0 : index
    %c0_4 = arith.constant 0 : index
    %3 = vector.load %arg3[%c0_3, %c0_4] : memref<1x128xf32, #tpu.memory_space<vmem>>, vector<1x128xf32>
    %4 = vector.broadcast %3 : vector<1x128xf32> to vector<16x128xf32>
    %5 = arith.addf %2, %4 : vector<16x128xf32>
    %c0_5 = arith.constant 0 : index
    %c0_6 = arith.constant 0 : index
    %6 = vector.load %arg2[%c0_5, %c0_6] : memref<32x128xf32, #tpu.memory_space<vmem>>, vector<32x128xf32>
    %c0_7 = arith.constant 0 : index
    %c0_8 = arith.constant 0 : index
    %7 = vector.load %arg4[%c0_7, %c0_8] : memref<32x128xf32, #tpu.memory_space<vmem>>, vector<32x128xf32>
    %c0_9 = arith.constant 0 : index
    %c0_10 = arith.constant 0 : index
    %8 = vector.load %arg5[%c0_9, %c0_10] : memref<32x128xf32, #tpu.memory_space<vmem>>, vector<32x128xf32>
    %c0_11 = arith.constant 0 : index
    %c0_12 = arith.constant 0 : index
    %9 = vector.load %arg6[%c0_11, %c0_12] : memref<1x128xf32, #tpu.memory_space<vmem>>, vector<1x128xf32>
    %10 = vector.shape_cast %9 : vector<1x128xf32> to vector<1x128xf32>
    %11 = vector.broadcast %10 : vector<1x128xf32> to vector<2x128xf32>
    %cst_13 = arith.constant 0.000000e+00 : f32
    %12 = vector.broadcast %cst_13 : f32 to vector<2x32xf32>
    %13 = vector.extract_strided_slice %5 {offsets = [0, 0], sizes = [2, 128], strides = [1, 1]} : vector<16x128xf32> to vector<2x128xf32>
    %cst_14 = arith.constant dense<0.000000e+00> : vector<2x128xf32>
    %14 = tpu.matmul %12, %6, %cst_14 {dimension_numbers = #tpu.dot_dimension_numbers<[1], [0], [0], [1], [0, 0, 1, 1], [], []>} : vector<2x32xf32>, vector<32x128xf32>, vector<2x128xf32> -> vector<2x128xf32>
    %15 = arith.addf %13, %14 : vector<2x128xf32>
    %16 = vector.extract_strided_slice %15 {offsets = [0, 0], sizes = [2, 96], strides = [1, 1]} : vector<2x128xf32> to vector<2x96xf32>
    %cst_15 = arith.constant 5.000000e-01 : f32
    %17 = vector.broadcast %cst_15 : f32 to vector<2x96xf32>
    %18 = arith.mulf %16, %17 : vector<2x96xf32>
    %19 = math.tanh %18 : vector<2x96xf32>
    %cst_16 = arith.constant 1.000000e+00 : f32
    %20 = vector.broadcast %cst_16 : f32 to vector<2x96xf32>
    %21 = arith.addf %19, %20 : vector<2x96xf32>
    %cst_17 = arith.constant 5.000000e-01 : f32
    %22 = vector.broadcast %cst_17 : f32 to vector<2x96xf32>
    %23 = arith.mulf %22, %21 : vector<2x96xf32>
    %24 = vector.extract_strided_slice %15 {offsets = [0, 96], sizes = [2, 32], strides = [1, 1]} : vector<2x128xf32> to vector<2x32xf32>
    %25 = math.tanh %24 : vector<2x32xf32>
    %26 = vector.extract_strided_slice %23 {offsets = [0, 0], sizes = [2, 32], strides = [1, 1]} : vector<2x96xf32> to vector<2x32xf32>
    %27 = vector.extract_strided_slice %23 {offsets = [0, 32], sizes = [2, 32], strides = [1, 1]} : vector<2x96xf32> to vector<2x32xf32>
    %28 = vector.extract_strided_slice %23 {offsets = [0, 64], sizes = [2, 32], strides = [1, 1]} : vector<2x96xf32> to vector<2x32xf32>
    %29 = arith.mulf %27, %12 : vector<2x32xf32>
    %30 = arith.mulf %26, %25 : vector<2x32xf32>
    %31 = arith.addf %29, %30 : vector<2x32xf32>
    %32 = math.tanh %31 : vector<2x32xf32>
    %33 = arith.mulf %28, %32 : vector<2x32xf32>
    %cst_18 = arith.constant dense<0.000000e+00> : vector<2x128xf32>
    %34 = tpu.matmul %12, %8, %cst_18 {dimension_numbers = #tpu.dot_dimension_numbers<[1], [0], [0], [1], [0, 0, 1, 1], [], []>} : vector<2x32xf32>, vector<32x128xf32>, vector<2x128xf32> -> vector<2x128xf32>
    %35 = arith.addf %34, %11 : vector<2x128xf32>
    %cst_19 = arith.constant dense<0.000000e+00> : vector<2x128xf32>
    %36 = tpu.matmul %33, %7, %cst_19 {dimension_numbers = #tpu.dot_dimension_numbers<[1], [0], [0], [1], [0, 0, 1, 1], [], []>} : vector<2x32xf32>, vector<32x128xf32>, vector<2x128xf32> -> vector<2x128xf32>
    %37 = arith.addf %36, %35 : vector<2x128xf32>
    %38 = vector.extract_strided_slice %37 {offsets = [0, 0], sizes = [2, 96], strides = [1, 1]} : vector<2x128xf32> to vector<2x96xf32>
    %cst_20 = arith.constant 5.000000e-01 : f32
    %39 = vector.broadcast %cst_20 : f32 to vector<2x96xf32>
    %40 = arith.mulf %38, %39 : vector<2x96xf32>
    %41 = math.tanh %40 : vector<2x96xf32>
    %cst_21 = arith.constant 1.000000e+00 : f32
    %42 = vector.broadcast %cst_21 : f32 to vector<2x96xf32>
    %43 = arith.addf %41, %42 : vector<2x96xf32>
    %cst_22 = arith.constant 5.000000e-01 : f32
    %44 = vector.broadcast %cst_22 : f32 to vector<2x96xf32>
    %45 = arith.mulf %44, %43 : vector<2x96xf32>
    %46 = vector.extract_strided_slice %37 {offsets = [0, 96], sizes = [2, 32], strides = [1, 1]} : vector<2x128xf32> to vector<2x32xf32>
    %47 = math.tanh %46 : vector<2x32xf32>
    %48 = vector.extract_strided_slice %45 {offsets = [0, 0], sizes = [2, 32], strides = [1, 1]} : vector<2x96xf32> to vector<2x32xf32>
    %49 = vector.extract_strided_slice %45 {offsets = [0, 32], sizes = [2, 32], strides = [1, 1]} : vector<2x96xf32> to vector<2x32xf32>
    %50 = vector.extract_strided_slice %45 {offsets = [0, 64], sizes = [2, 32], strides = [1, 1]} : vector<2x96xf32> to vector<2x32xf32>
    %51 = arith.mulf %49, %12 : vector<2x32xf32>
    %52 = arith.mulf %48, %47 : vector<2x32xf32>
    %53 = arith.addf %51, %52 : vector<2x32xf32>
    %54 = math.tanh %53 : vector<2x32xf32>
    %55 = arith.mulf %50, %54 : vector<2x32xf32>
    %56 = vector.extract_strided_slice %5 {offsets = [2, 0], sizes = [2, 128], strides = [1, 1]} : vector<16x128xf32> to vector<2x128xf32>
    %cst_23 = arith.constant dense<0.000000e+00> : vector<2x128xf32>
    %57 = tpu.matmul %33, %6, %cst_23 {dimension_numbers = #tpu.dot_dimension_numbers<[1], [0], [0], [1], [0, 0, 1, 1], [], []>} : vector<2x32xf32>, vector<32x128xf32>, vector<2x128xf32> -> vector<2x128xf32>
    %58 = arith.addf %56, %57 : vector<2x128xf32>
    %59 = vector.extract_strided_slice %58 {offsets = [0, 0], sizes = [2, 96], strides = [1, 1]} : vector<2x128xf32> to vector<2x96xf32>
    %cst_24 = arith.constant 5.000000e-01 : f32
    %60 = vector.broadcast %cst_24 : f32 to vector<2x96xf32>
    %61 = arith.mulf %59, %60 : vector<2x96xf32>
    %62 = math.tanh %61 : vector<2x96xf32>
    %cst_25 = arith.constant 1.000000e+00 : f32
    %63 = vector.broadcast %cst_25 : f32 to vector<2x96xf32>
    %64 = arith.addf %62, %63 : vector<2x96xf32>
    %cst_26 = arith.constant 5.000000e-01 : f32
    %65 = vector.broadcast %cst_26 : f32 to vector<2x96xf32>
    %66 = arith.mulf %65, %64 : vector<2x96xf32>
    %67 = vector.extract_strided_slice %58 {offsets = [0, 96], sizes = [2, 32], strides = [1, 1]} : vector<2x128xf32> to vector<2x32xf32>
    %68 = math.tanh %67 : vector<2x32xf32>
    %69 = vector.extract_strided_slice %66 {offsets = [0, 0], sizes = [2, 32], strides = [1, 1]} : vector<2x96xf32> to vector<2x32xf32>
    %70 = vector.extract_strided_slice %66 {offsets = [0, 32], sizes = [2, 32], strides = [1, 1]} : vector<2x96xf32> to vector<2x32xf32>
    %71 = vector.extract_strided_slice %66 {offsets = [0, 64], sizes = [2, 32], strides = [1, 1]} : vector<2x96xf32> to vector<2x32xf32>
    %72 = arith.mulf %70, %31 : vector<2x32xf32>
    %73 = arith.mulf %69, %68 : vector<2x32xf32>
    %74 = arith.addf %72, %73 : vector<2x32xf32>
    %75 = math.tanh %74 : vector<2x32xf32>
    %76 = arith.mulf %71, %75 : vector<2x32xf32>
    %cst_27 = arith.constant dense<0.000000e+00> : vector<2x128xf32>
    %77 = tpu.matmul %55, %8, %cst_27 {dimension_numbers = #tpu.dot_dimension_numbers<[1], [0], [0], [1], [0, 0, 1, 1], [], []>} : vector<2x32xf32>, vector<32x128xf32>, vector<2x128xf32> -> vector<2x128xf32>
    %78 = arith.addf %77, %11 : vector<2x128xf32>
    %cst_28 = arith.constant dense<0.000000e+00> : vector<2x128xf32>
    %79 = tpu.matmul %76, %7, %cst_28 {dimension_numbers = #tpu.dot_dimension_numbers<[1], [0], [0], [1], [0, 0, 1, 1], [], []>} : vector<2x32xf32>, vector<32x128xf32>, vector<2x128xf32> -> vector<2x128xf32>
    %80 = arith.addf %79, %78 : vector<2x128xf32>
    %81 = vector.extract_strided_slice %80 {offsets = [0, 0], sizes = [2, 96], strides = [1, 1]} : vector<2x128xf32> to vector<2x96xf32>
    %cst_29 = arith.constant 5.000000e-01 : f32
    %82 = vector.broadcast %cst_29 : f32 to vector<2x96xf32>
    %83 = arith.mulf %81, %82 : vector<2x96xf32>
    %84 = math.tanh %83 : vector<2x96xf32>
    %cst_30 = arith.constant 1.000000e+00 : f32
    %85 = vector.broadcast %cst_30 : f32 to vector<2x96xf32>
    %86 = arith.addf %84, %85 : vector<2x96xf32>
    %cst_31 = arith.constant 5.000000e-01 : f32
    %87 = vector.broadcast %cst_31 : f32 to vector<2x96xf32>
    %88 = arith.mulf %87, %86 : vector<2x96xf32>
    %89 = vector.extract_strided_slice %80 {offsets = [0, 96], sizes = [2, 32], strides = [1, 1]} : vector<2x128xf32> to vector<2x32xf32>
    %90 = math.tanh %89 : vector<2x32xf32>
    %91 = vector.extract_strided_slice %88 {offsets = [0, 0], sizes = [2, 32], strides = [1, 1]} : vector<2x96xf32> to vector<2x32xf32>
    %92 = vector.extract_strided_slice %88 {offsets = [0, 32], sizes = [2, 32], strides = [1, 1]} : vector<2x96xf32> to vector<2x32xf32>
    %93 = vector.extract_strided_slice %88 {offsets = [0, 64], sizes = [2, 32], strides = [1, 1]} : vector<2x96xf32> to vector<2x32xf32>
    %94 = arith.mulf %92, %53 : vector<2x32xf32>
    %95 = arith.mulf %91, %90 : vector<2x32xf32>
    %96 = arith.addf %94, %95 : vector<2x32xf32>
    %97 = math.tanh %96 : vector<2x32xf32>
    %98 = arith.mulf %93, %97 : vector<2x32xf32>
    %99 = vector.extract_strided_slice %5 {offsets = [4, 0], sizes = [2, 128], strides = [1, 1]} : vector<16x128xf32> to vector<2x128xf32>
    %cst_32 = arith.constant dense<0.000000e+00> : vector<2x128xf32>
    %100 = tpu.matmul %76, %6, %cst_32 {dimension_numbers = #tpu.dot_dimension_numbers<[1], [0], [0], [1], [0, 0, 1, 1], [], []>} : vector<2x32xf32>, vector<32x128xf32>, vector<2x128xf32> -> vector<2x128xf32>
    %101 = arith.addf %99, %100 : vector<2x128xf32>
    %102 = vector.extract_strided_slice %101 {offsets = [0, 0], sizes = [2, 96], strides = [1, 1]} : vector<2x128xf32> to vector<2x96xf32>
    %cst_33 = arith.constant 5.000000e-01 : f32
    %103 = vector.broadcast %cst_33 : f32 to vector<2x96xf32>
    %104 = arith.mulf %102, %103 : vector<2x96xf32>
    %105 = math.tanh %104 : vector<2x96xf32>
    %cst_34 = arith.constant 1.000000e+00 : f32
    %106 = vector.broadcast %cst_34 : f32 to vector<2x96xf32>
    %107 = arith.addf %105, %106 : vector<2x96xf32>
    %cst_35 = arith.constant 5.000000e-01 : f32
    %108 = vector.broadcast %cst_35 : f32 to vector<2x96xf32>
    %109 = arith.mulf %108, %107 : vector<2x96xf32>
    %110 = vector.extract_strided_slice %101 {offsets = [0, 96], sizes = [2, 32], strides = [1, 1]} : vector<2x128xf32> to vector<2x32xf32>
    %111 = math.tanh %110 : vector<2x32xf32>
    %112 = vector.extract_strided_slice %109 {offsets = [0, 0], sizes = [2, 32], strides = [1, 1]} : vector<2x96xf32> to vector<2x32xf32>
    %113 = vector.extract_strided_slice %109 {offsets = [0, 32], sizes = [2, 32], strides = [1, 1]} : vector<2x96xf32> to vector<2x32xf32>
    %114 = vector.extract_strided_slice %109 {offsets = [0, 64], sizes = [2, 32], strides = [1, 1]} : vector<2x96xf32> to vector<2x32xf32>
    %115 = arith.mulf %113, %74 : vector<2x32xf32>
    %116 = arith.mulf %112, %111 : vector<2x32xf32>
    %117 = arith.addf %115, %116 : vector<2x32xf32>
    %118 = math.tanh %117 : vector<2x32xf32>
    %119 = arith.mulf %114, %118 : vector<2x32xf32>
    %cst_36 = arith.constant dense<0.000000e+00> : vector<2x128xf32>
    %120 = tpu.matmul %98, %8, %cst_36 {dimension_numbers = #tpu.dot_dimension_numbers<[1], [0], [0], [1], [0, 0, 1, 1], [], []>} : vector<2x32xf32>, vector<32x128xf32>, vector<2x128xf32> -> vector<2x128xf32>
    %121 = arith.addf %120, %11 : vector<2x128xf32>
    %cst_37 = arith.constant dense<0.000000e+00> : vector<2x128xf32>
    %122 = tpu.matmul %119, %7, %cst_37 {dimension_numbers = #tpu.dot_dimension_numbers<[1], [0], [0], [1], [0, 0, 1, 1], [], []>} : vector<2x32xf32>, vector<32x128xf32>, vector<2x128xf32> -> vector<2x128xf32>
    %123 = arith.addf %122, %121 : vector<2x128xf32>
    %124 = vector.extract_strided_slice %123 {offsets = [0, 0], sizes = [2, 96], strides = [1, 1]} : vector<2x128xf32> to vector<2x96xf32>
    %cst_38 = arith.constant 5.000000e-01 : f32
    %125 = vector.broadcast %cst_38 : f32 to vector<2x96xf32>
    %126 = arith.mulf %124, %125 : vector<2x96xf32>
    %127 = math.tanh %126 : vector<2x96xf32>
    %cst_39 = arith.constant 1.000000e+00 : f32
    %128 = vector.broadcast %cst_39 : f32 to vector<2x96xf32>
    %129 = arith.addf %127, %128 : vector<2x96xf32>
    %cst_40 = arith.constant 5.000000e-01 : f32
    %130 = vector.broadcast %cst_40 : f32 to vector<2x96xf32>
    %131 = arith.mulf %130, %129 : vector<2x96xf32>
    %132 = vector.extract_strided_slice %123 {offsets = [0, 96], sizes = [2, 32], strides = [1, 1]} : vector<2x128xf32> to vector<2x32xf32>
    %133 = math.tanh %132 : vector<2x32xf32>
    %134 = vector.extract_strided_slice %131 {offsets = [0, 0], sizes = [2, 32], strides = [1, 1]} : vector<2x96xf32> to vector<2x32xf32>
    %135 = vector.extract_strided_slice %131 {offsets = [0, 32], sizes = [2, 32], strides = [1, 1]} : vector<2x96xf32> to vector<2x32xf32>
    %136 = vector.extract_strided_slice %131 {offsets = [0, 64], sizes = [2, 32], strides = [1, 1]} : vector<2x96xf32> to vector<2x32xf32>
    %137 = arith.mulf %135, %96 : vector<2x32xf32>
    %138 = arith.mulf %134, %133 : vector<2x32xf32>
    %139 = arith.addf %137, %138 : vector<2x32xf32>
    %140 = math.tanh %139 : vector<2x32xf32>
    %141 = arith.mulf %136, %140 : vector<2x32xf32>
    %142 = vector.extract_strided_slice %5 {offsets = [6, 0], sizes = [2, 128], strides = [1, 1]} : vector<16x128xf32> to vector<2x128xf32>
    %cst_41 = arith.constant dense<0.000000e+00> : vector<2x128xf32>
    %143 = tpu.matmul %119, %6, %cst_41 {dimension_numbers = #tpu.dot_dimension_numbers<[1], [0], [0], [1], [0, 0, 1, 1], [], []>} : vector<2x32xf32>, vector<32x128xf32>, vector<2x128xf32> -> vector<2x128xf32>
    %144 = arith.addf %142, %143 : vector<2x128xf32>
    %145 = vector.extract_strided_slice %144 {offsets = [0, 0], sizes = [2, 96], strides = [1, 1]} : vector<2x128xf32> to vector<2x96xf32>
    %cst_42 = arith.constant 5.000000e-01 : f32
    %146 = vector.broadcast %cst_42 : f32 to vector<2x96xf32>
    %147 = arith.mulf %145, %146 : vector<2x96xf32>
    %148 = math.tanh %147 : vector<2x96xf32>
    %cst_43 = arith.constant 1.000000e+00 : f32
    %149 = vector.broadcast %cst_43 : f32 to vector<2x96xf32>
    %150 = arith.addf %148, %149 : vector<2x96xf32>
    %cst_44 = arith.constant 5.000000e-01 : f32
    %151 = vector.broadcast %cst_44 : f32 to vector<2x96xf32>
    %152 = arith.mulf %151, %150 : vector<2x96xf32>
    %153 = vector.extract_strided_slice %144 {offsets = [0, 96], sizes = [2, 32], strides = [1, 1]} : vector<2x128xf32> to vector<2x32xf32>
    %154 = math.tanh %153 : vector<2x32xf32>
    %155 = vector.extract_strided_slice %152 {offsets = [0, 0], sizes = [2, 32], strides = [1, 1]} : vector<2x96xf32> to vector<2x32xf32>
    %156 = vector.extract_strided_slice %152 {offsets = [0, 32], sizes = [2, 32], strides = [1, 1]} : vector<2x96xf32> to vector<2x32xf32>
    %157 = vector.extract_strided_slice %152 {offsets = [0, 64], sizes = [2, 32], strides = [1, 1]} : vector<2x96xf32> to vector<2x32xf32>
    %158 = arith.mulf %156, %117 : vector<2x32xf32>
    %159 = arith.mulf %155, %154 : vector<2x32xf32>
    %160 = arith.addf %158, %159 : vector<2x32xf32>
    %161 = math.tanh %160 : vector<2x32xf32>
    %162 = arith.mulf %157, %161 : vector<2x32xf32>
    %cst_45 = arith.constant dense<0.000000e+00> : vector<2x128xf32>
    %163 = tpu.matmul %141, %8, %cst_45 {dimension_numbers = #tpu.dot_dimension_numbers<[1], [0], [0], [1], [0, 0, 1, 1], [], []>} : vector<2x32xf32>, vector<32x128xf32>, vector<2x128xf32> -> vector<2x128xf32>
    %164 = arith.addf %163, %11 : vector<2x128xf32>
    %cst_46 = arith.constant dense<0.000000e+00> : vector<2x128xf32>
    %165 = tpu.matmul %162, %7, %cst_46 {dimension_numbers = #tpu.dot_dimension_numbers<[1], [0], [0], [1], [0, 0, 1, 1], [], []>} : vector<2x32xf32>, vector<32x128xf32>, vector<2x128xf32> -> vector<2x128xf32>
    %166 = arith.addf %165, %164 : vector<2x128xf32>
    %167 = vector.extract_strided_slice %166 {offsets = [0, 0], sizes = [2, 96], strides = [1, 1]} : vector<2x128xf32> to vector<2x96xf32>
    %cst_47 = arith.constant 5.000000e-01 : f32
    %168 = vector.broadcast %cst_47 : f32 to vector<2x96xf32>
    %169 = arith.mulf %167, %168 : vector<2x96xf32>
    %170 = math.tanh %169 : vector<2x96xf32>
    %cst_48 = arith.constant 1.000000e+00 : f32
    %171 = vector.broadcast %cst_48 : f32 to vector<2x96xf32>
    %172 = arith.addf %170, %171 : vector<2x96xf32>
    %cst_49 = arith.constant 5.000000e-01 : f32
    %173 = vector.broadcast %cst_49 : f32 to vector<2x96xf32>
    %174 = arith.mulf %173, %172 : vector<2x96xf32>
    %175 = vector.extract_strided_slice %166 {offsets = [0, 96], sizes = [2, 32], strides = [1, 1]} : vector<2x128xf32> to vector<2x32xf32>
    %176 = math.tanh %175 : vector<2x32xf32>
    %177 = vector.extract_strided_slice %174 {offsets = [0, 0], sizes = [2, 32], strides = [1, 1]} : vector<2x96xf32> to vector<2x32xf32>
    %178 = vector.extract_strided_slice %174 {offsets = [0, 32], sizes = [2, 32], strides = [1, 1]} : vector<2x96xf32> to vector<2x32xf32>
    %179 = vector.extract_strided_slice %174 {offsets = [0, 64], sizes = [2, 32], strides = [1, 1]} : vector<2x96xf32> to vector<2x32xf32>
    %180 = arith.mulf %178, %139 : vector<2x32xf32>
    %181 = arith.mulf %177, %176 : vector<2x32xf32>
    %182 = arith.addf %180, %181 : vector<2x32xf32>
    %183 = math.tanh %182 : vector<2x32xf32>
    %184 = arith.mulf %179, %183 : vector<2x32xf32>
    %185 = vector.extract_strided_slice %5 {offsets = [8, 0], sizes = [2, 128], strides = [1, 1]} : vector<16x128xf32> to vector<2x128xf32>
    %cst_50 = arith.constant dense<0.000000e+00> : vector<2x128xf32>
    %186 = tpu.matmul %162, %6, %cst_50 {dimension_numbers = #tpu.dot_dimension_numbers<[1], [0], [0], [1], [0, 0, 1, 1], [], []>} : vector<2x32xf32>, vector<32x128xf32>, vector<2x128xf32> -> vector<2x128xf32>
    %187 = arith.addf %185, %186 : vector<2x128xf32>
    %188 = vector.extract_strided_slice %187 {offsets = [0, 0], sizes = [2, 96], strides = [1, 1]} : vector<2x128xf32> to vector<2x96xf32>
    %cst_51 = arith.constant 5.000000e-01 : f32
    %189 = vector.broadcast %cst_51 : f32 to vector<2x96xf32>
    %190 = arith.mulf %188, %189 : vector<2x96xf32>
    %191 = math.tanh %190 : vector<2x96xf32>
    %cst_52 = arith.constant 1.000000e+00 : f32
    %192 = vector.broadcast %cst_52 : f32 to vector<2x96xf32>
    %193 = arith.addf %191, %192 : vector<2x96xf32>
    %cst_53 = arith.constant 5.000000e-01 : f32
    %194 = vector.broadcast %cst_53 : f32 to vector<2x96xf32>
    %195 = arith.mulf %194, %193 : vector<2x96xf32>
    %196 = vector.extract_strided_slice %187 {offsets = [0, 96], sizes = [2, 32], strides = [1, 1]} : vector<2x128xf32> to vector<2x32xf32>
    %197 = math.tanh %196 : vector<2x32xf32>
    %198 = vector.extract_strided_slice %195 {offsets = [0, 0], sizes = [2, 32], strides = [1, 1]} : vector<2x96xf32> to vector<2x32xf32>
    %199 = vector.extract_strided_slice %195 {offsets = [0, 32], sizes = [2, 32], strides = [1, 1]} : vector<2x96xf32> to vector<2x32xf32>
    %200 = vector.extract_strided_slice %195 {offsets = [0, 64], sizes = [2, 32], strides = [1, 1]} : vector<2x96xf32> to vector<2x32xf32>
    %201 = arith.mulf %199, %160 : vector<2x32xf32>
    %202 = arith.mulf %198, %197 : vector<2x32xf32>
    %203 = arith.addf %201, %202 : vector<2x32xf32>
    %204 = math.tanh %203 : vector<2x32xf32>
    %205 = arith.mulf %200, %204 : vector<2x32xf32>
    %cst_54 = arith.constant dense<0.000000e+00> : vector<2x128xf32>
    %206 = tpu.matmul %184, %8, %cst_54 {dimension_numbers = #tpu.dot_dimension_numbers<[1], [0], [0], [1], [0, 0, 1, 1], [], []>} : vector<2x32xf32>, vector<32x128xf32>, vector<2x128xf32> -> vector<2x128xf32>
    %207 = arith.addf %206, %11 : vector<2x128xf32>
    %cst_55 = arith.constant dense<0.000000e+00> : vector<2x128xf32>
    %208 = tpu.matmul %205, %7, %cst_55 {dimension_numbers = #tpu.dot_dimension_numbers<[1], [0], [0], [1], [0, 0, 1, 1], [], []>} : vector<2x32xf32>, vector<32x128xf32>, vector<2x128xf32> -> vector<2x128xf32>
    %209 = arith.addf %208, %207 : vector<2x128xf32>
    %210 = vector.extract_strided_slice %209 {offsets = [0, 0], sizes = [2, 96], strides = [1, 1]} : vector<2x128xf32> to vector<2x96xf32>
    %cst_56 = arith.constant 5.000000e-01 : f32
    %211 = vector.broadcast %cst_56 : f32 to vector<2x96xf32>
    %212 = arith.mulf %210, %211 : vector<2x96xf32>
    %213 = math.tanh %212 : vector<2x96xf32>
    %cst_57 = arith.constant 1.000000e+00 : f32
    %214 = vector.broadcast %cst_57 : f32 to vector<2x96xf32>
    %215 = arith.addf %213, %214 : vector<2x96xf32>
    %cst_58 = arith.constant 5.000000e-01 : f32
    %216 = vector.broadcast %cst_58 : f32 to vector<2x96xf32>
    %217 = arith.mulf %216, %215 : vector<2x96xf32>
    %218 = vector.extract_strided_slice %209 {offsets = [0, 96], sizes = [2, 32], strides = [1, 1]} : vector<2x128xf32> to vector<2x32xf32>
    %219 = math.tanh %218 : vector<2x32xf32>
    %220 = vector.extract_strided_slice %217 {offsets = [0, 0], sizes = [2, 32], strides = [1, 1]} : vector<2x96xf32> to vector<2x32xf32>
    %221 = vector.extract_strided_slice %217 {offsets = [0, 32], sizes = [2, 32], strides = [1, 1]} : vector<2x96xf32> to vector<2x32xf32>
    %222 = vector.extract_strided_slice %217 {offsets = [0, 64], sizes = [2, 32], strides = [1, 1]} : vector<2x96xf32> to vector<2x32xf32>
    %223 = arith.mulf %221, %182 : vector<2x32xf32>
    %224 = arith.mulf %220, %219 : vector<2x32xf32>
    %225 = arith.addf %223, %224 : vector<2x32xf32>
    %226 = math.tanh %225 : vector<2x32xf32>
    %227 = arith.mulf %222, %226 : vector<2x32xf32>
    %228 = vector.extract_strided_slice %5 {offsets = [10, 0], sizes = [2, 128], strides = [1, 1]} : vector<16x128xf32> to vector<2x128xf32>
    %cst_59 = arith.constant dense<0.000000e+00> : vector<2x128xf32>
    %229 = tpu.matmul %205, %6, %cst_59 {dimension_numbers = #tpu.dot_dimension_numbers<[1], [0], [0], [1], [0, 0, 1, 1], [], []>} : vector<2x32xf32>, vector<32x128xf32>, vector<2x128xf32> -> vector<2x128xf32>
    %230 = arith.addf %228, %229 : vector<2x128xf32>
    %231 = vector.extract_strided_slice %230 {offsets = [0, 0], sizes = [2, 96], strides = [1, 1]} : vector<2x128xf32> to vector<2x96xf32>
    %cst_60 = arith.constant 5.000000e-01 : f32
    %232 = vector.broadcast %cst_60 : f32 to vector<2x96xf32>
    %233 = arith.mulf %231, %232 : vector<2x96xf32>
    %234 = math.tanh %233 : vector<2x96xf32>
    %cst_61 = arith.constant 1.000000e+00 : f32
    %235 = vector.broadcast %cst_61 : f32 to vector<2x96xf32>
    %236 = arith.addf %234, %235 : vector<2x96xf32>
    %cst_62 = arith.constant 5.000000e-01 : f32
    %237 = vector.broadcast %cst_62 : f32 to vector<2x96xf32>
    %238 = arith.mulf %237, %236 : vector<2x96xf32>
    %239 = vector.extract_strided_slice %230 {offsets = [0, 96], sizes = [2, 32], strides = [1, 1]} : vector<2x128xf32> to vector<2x32xf32>
    %240 = math.tanh %239 : vector<2x32xf32>
    %241 = vector.extract_strided_slice %238 {offsets = [0, 0], sizes = [2, 32], strides = [1, 1]} : vector<2x96xf32> to vector<2x32xf32>
    %242 = vector.extract_strided_slice %238 {offsets = [0, 32], sizes = [2, 32], strides = [1, 1]} : vector<2x96xf32> to vector<2x32xf32>
    %243 = vector.extract_strided_slice %238 {offsets = [0, 64], sizes = [2, 32], strides = [1, 1]} : vector<2x96xf32> to vector<2x32xf32>
    %244 = arith.mulf %242, %203 : vector<2x32xf32>
    %245 = arith.mulf %241, %240 : vector<2x32xf32>
    %246 = arith.addf %244, %245 : vector<2x32xf32>
    %247 = math.tanh %246 : vector<2x32xf32>
    %248 = arith.mulf %243, %247 : vector<2x32xf32>
    %cst_63 = arith.constant dense<0.000000e+00> : vector<2x128xf32>
    %249 = tpu.matmul %227, %8, %cst_63 {dimension_numbers = #tpu.dot_dimension_numbers<[1], [0], [0], [1], [0, 0, 1, 1], [], []>} : vector<2x32xf32>, vector<32x128xf32>, vector<2x128xf32> -> vector<2x128xf32>
    %250 = arith.addf %249, %11 : vector<2x128xf32>
    %cst_64 = arith.constant dense<0.000000e+00> : vector<2x128xf32>
    %251 = tpu.matmul %248, %7, %cst_64 {dimension_numbers = #tpu.dot_dimension_numbers<[1], [0], [0], [1], [0, 0, 1, 1], [], []>} : vector<2x32xf32>, vector<32x128xf32>, vector<2x128xf32> -> vector<2x128xf32>
    %252 = arith.addf %251, %250 : vector<2x128xf32>
    %253 = vector.extract_strided_slice %252 {offsets = [0, 0], sizes = [2, 96], strides = [1, 1]} : vector<2x128xf32> to vector<2x96xf32>
    %cst_65 = arith.constant 5.000000e-01 : f32
    %254 = vector.broadcast %cst_65 : f32 to vector<2x96xf32>
    %255 = arith.mulf %253, %254 : vector<2x96xf32>
    %256 = math.tanh %255 : vector<2x96xf32>
    %cst_66 = arith.constant 1.000000e+00 : f32
    %257 = vector.broadcast %cst_66 : f32 to vector<2x96xf32>
    %258 = arith.addf %256, %257 : vector<2x96xf32>
    %cst_67 = arith.constant 5.000000e-01 : f32
    %259 = vector.broadcast %cst_67 : f32 to vector<2x96xf32>
    %260 = arith.mulf %259, %258 : vector<2x96xf32>
    %261 = vector.extract_strided_slice %252 {offsets = [0, 96], sizes = [2, 32], strides = [1, 1]} : vector<2x128xf32> to vector<2x32xf32>
    %262 = math.tanh %261 : vector<2x32xf32>
    %263 = vector.extract_strided_slice %260 {offsets = [0, 0], sizes = [2, 32], strides = [1, 1]} : vector<2x96xf32> to vector<2x32xf32>
    %264 = vector.extract_strided_slice %260 {offsets = [0, 32], sizes = [2, 32], strides = [1, 1]} : vector<2x96xf32> to vector<2x32xf32>
    %265 = vector.extract_strided_slice %260 {offsets = [0, 64], sizes = [2, 32], strides = [1, 1]} : vector<2x96xf32> to vector<2x32xf32>
    %266 = arith.mulf %264, %225 : vector<2x32xf32>
    %267 = arith.mulf %263, %262 : vector<2x32xf32>
    %268 = arith.addf %266, %267 : vector<2x32xf32>
    %269 = math.tanh %268 : vector<2x32xf32>
    %270 = arith.mulf %265, %269 : vector<2x32xf32>
    %271 = vector.extract_strided_slice %5 {offsets = [12, 0], sizes = [2, 128], strides = [1, 1]} : vector<16x128xf32> to vector<2x128xf32>
    %cst_68 = arith.constant dense<0.000000e+00> : vector<2x128xf32>
    %272 = tpu.matmul %248, %6, %cst_68 {dimension_numbers = #tpu.dot_dimension_numbers<[1], [0], [0], [1], [0, 0, 1, 1], [], []>} : vector<2x32xf32>, vector<32x128xf32>, vector<2x128xf32> -> vector<2x128xf32>
    %273 = arith.addf %271, %272 : vector<2x128xf32>
    %274 = vector.extract_strided_slice %273 {offsets = [0, 0], sizes = [2, 96], strides = [1, 1]} : vector<2x128xf32> to vector<2x96xf32>
    %cst_69 = arith.constant 5.000000e-01 : f32
    %275 = vector.broadcast %cst_69 : f32 to vector<2x96xf32>
    %276 = arith.mulf %274, %275 : vector<2x96xf32>
    %277 = math.tanh %276 : vector<2x96xf32>
    %cst_70 = arith.constant 1.000000e+00 : f32
    %278 = vector.broadcast %cst_70 : f32 to vector<2x96xf32>
    %279 = arith.addf %277, %278 : vector<2x96xf32>
    %cst_71 = arith.constant 5.000000e-01 : f32
    %280 = vector.broadcast %cst_71 : f32 to vector<2x96xf32>
    %281 = arith.mulf %280, %279 : vector<2x96xf32>
    %282 = vector.extract_strided_slice %273 {offsets = [0, 96], sizes = [2, 32], strides = [1, 1]} : vector<2x128xf32> to vector<2x32xf32>
    %283 = math.tanh %282 : vector<2x32xf32>
    %284 = vector.extract_strided_slice %281 {offsets = [0, 0], sizes = [2, 32], strides = [1, 1]} : vector<2x96xf32> to vector<2x32xf32>
    %285 = vector.extract_strided_slice %281 {offsets = [0, 32], sizes = [2, 32], strides = [1, 1]} : vector<2x96xf32> to vector<2x32xf32>
    %286 = vector.extract_strided_slice %281 {offsets = [0, 64], sizes = [2, 32], strides = [1, 1]} : vector<2x96xf32> to vector<2x32xf32>
    %287 = arith.mulf %285, %246 : vector<2x32xf32>
    %288 = arith.mulf %284, %283 : vector<2x32xf32>
    %289 = arith.addf %287, %288 : vector<2x32xf32>
    %290 = math.tanh %289 : vector<2x32xf32>
    %291 = arith.mulf %286, %290 : vector<2x32xf32>
    %cst_72 = arith.constant dense<0.000000e+00> : vector<2x128xf32>
    %292 = tpu.matmul %270, %8, %cst_72 {dimension_numbers = #tpu.dot_dimension_numbers<[1], [0], [0], [1], [0, 0, 1, 1], [], []>} : vector<2x32xf32>, vector<32x128xf32>, vector<2x128xf32> -> vector<2x128xf32>
    %293 = arith.addf %292, %11 : vector<2x128xf32>
    %cst_73 = arith.constant dense<0.000000e+00> : vector<2x128xf32>
    %294 = tpu.matmul %291, %7, %cst_73 {dimension_numbers = #tpu.dot_dimension_numbers<[1], [0], [0], [1], [0, 0, 1, 1], [], []>} : vector<2x32xf32>, vector<32x128xf32>, vector<2x128xf32> -> vector<2x128xf32>
    %295 = arith.addf %294, %293 : vector<2x128xf32>
    %296 = vector.extract_strided_slice %295 {offsets = [0, 0], sizes = [2, 96], strides = [1, 1]} : vector<2x128xf32> to vector<2x96xf32>
    %cst_74 = arith.constant 5.000000e-01 : f32
    %297 = vector.broadcast %cst_74 : f32 to vector<2x96xf32>
    %298 = arith.mulf %296, %297 : vector<2x96xf32>
    %299 = math.tanh %298 : vector<2x96xf32>
    %cst_75 = arith.constant 1.000000e+00 : f32
    %300 = vector.broadcast %cst_75 : f32 to vector<2x96xf32>
    %301 = arith.addf %299, %300 : vector<2x96xf32>
    %cst_76 = arith.constant 5.000000e-01 : f32
    %302 = vector.broadcast %cst_76 : f32 to vector<2x96xf32>
    %303 = arith.mulf %302, %301 : vector<2x96xf32>
    %304 = vector.extract_strided_slice %295 {offsets = [0, 96], sizes = [2, 32], strides = [1, 1]} : vector<2x128xf32> to vector<2x32xf32>
    %305 = math.tanh %304 : vector<2x32xf32>
    %306 = vector.extract_strided_slice %303 {offsets = [0, 0], sizes = [2, 32], strides = [1, 1]} : vector<2x96xf32> to vector<2x32xf32>
    %307 = vector.extract_strided_slice %303 {offsets = [0, 32], sizes = [2, 32], strides = [1, 1]} : vector<2x96xf32> to vector<2x32xf32>
    %308 = vector.extract_strided_slice %303 {offsets = [0, 64], sizes = [2, 32], strides = [1, 1]} : vector<2x96xf32> to vector<2x32xf32>
    %309 = arith.mulf %307, %268 : vector<2x32xf32>
    %310 = arith.mulf %306, %305 : vector<2x32xf32>
    %311 = arith.addf %309, %310 : vector<2x32xf32>
    %312 = math.tanh %311 : vector<2x32xf32>
    %313 = arith.mulf %308, %312 : vector<2x32xf32>
    %314 = vector.extract_strided_slice %5 {offsets = [14, 0], sizes = [2, 128], strides = [1, 1]} : vector<16x128xf32> to vector<2x128xf32>
    %cst_77 = arith.constant dense<0.000000e+00> : vector<2x128xf32>
    %315 = tpu.matmul %291, %6, %cst_77 {dimension_numbers = #tpu.dot_dimension_numbers<[1], [0], [0], [1], [0, 0, 1, 1], [], []>} : vector<2x32xf32>, vector<32x128xf32>, vector<2x128xf32> -> vector<2x128xf32>
    %316 = arith.addf %314, %315 : vector<2x128xf32>
    %317 = vector.extract_strided_slice %316 {offsets = [0, 0], sizes = [2, 96], strides = [1, 1]} : vector<2x128xf32> to vector<2x96xf32>
    %cst_78 = arith.constant 5.000000e-01 : f32
    %318 = vector.broadcast %cst_78 : f32 to vector<2x96xf32>
    %319 = arith.mulf %317, %318 : vector<2x96xf32>
    %320 = math.tanh %319 : vector<2x96xf32>
    %cst_79 = arith.constant 1.000000e+00 : f32
    %321 = vector.broadcast %cst_79 : f32 to vector<2x96xf32>
    %322 = arith.addf %320, %321 : vector<2x96xf32>
    %cst_80 = arith.constant 5.000000e-01 : f32
    %323 = vector.broadcast %cst_80 : f32 to vector<2x96xf32>
    %324 = arith.mulf %323, %322 : vector<2x96xf32>
    %325 = vector.extract_strided_slice %316 {offsets = [0, 96], sizes = [2, 32], strides = [1, 1]} : vector<2x128xf32> to vector<2x32xf32>
    %326 = math.tanh %325 : vector<2x32xf32>
    %327 = vector.extract_strided_slice %324 {offsets = [0, 0], sizes = [2, 32], strides = [1, 1]} : vector<2x96xf32> to vector<2x32xf32>
    %328 = vector.extract_strided_slice %324 {offsets = [0, 32], sizes = [2, 32], strides = [1, 1]} : vector<2x96xf32> to vector<2x32xf32>
    %329 = vector.extract_strided_slice %324 {offsets = [0, 64], sizes = [2, 32], strides = [1, 1]} : vector<2x96xf32> to vector<2x32xf32>
    %330 = arith.mulf %328, %289 : vector<2x32xf32>
    %331 = arith.mulf %327, %326 : vector<2x32xf32>
    %332 = arith.addf %330, %331 : vector<2x32xf32>
    %333 = math.tanh %332 : vector<2x32xf32>
    %334 = arith.mulf %329, %333 : vector<2x32xf32>
    %cst_81 = arith.constant dense<0.000000e+00> : vector<2x128xf32>
    %335 = tpu.matmul %313, %8, %cst_81 {dimension_numbers = #tpu.dot_dimension_numbers<[1], [0], [0], [1], [0, 0, 1, 1], [], []>} : vector<2x32xf32>, vector<32x128xf32>, vector<2x128xf32> -> vector<2x128xf32>
    %336 = arith.addf %335, %11 : vector<2x128xf32>
    %cst_82 = arith.constant dense<0.000000e+00> : vector<2x128xf32>
    %337 = tpu.matmul %334, %7, %cst_82 {dimension_numbers = #tpu.dot_dimension_numbers<[1], [0], [0], [1], [0, 0, 1, 1], [], []>} : vector<2x32xf32>, vector<32x128xf32>, vector<2x128xf32> -> vector<2x128xf32>
    %338 = arith.addf %337, %336 : vector<2x128xf32>
    %339 = vector.extract_strided_slice %338 {offsets = [0, 0], sizes = [2, 96], strides = [1, 1]} : vector<2x128xf32> to vector<2x96xf32>
    %cst_83 = arith.constant 5.000000e-01 : f32
    %340 = vector.broadcast %cst_83 : f32 to vector<2x96xf32>
    %341 = arith.mulf %339, %340 : vector<2x96xf32>
    %342 = math.tanh %341 : vector<2x96xf32>
    %cst_84 = arith.constant 1.000000e+00 : f32
    %343 = vector.broadcast %cst_84 : f32 to vector<2x96xf32>
    %344 = arith.addf %342, %343 : vector<2x96xf32>
    %cst_85 = arith.constant 5.000000e-01 : f32
    %345 = vector.broadcast %cst_85 : f32 to vector<2x96xf32>
    %346 = arith.mulf %345, %344 : vector<2x96xf32>
    %347 = vector.extract_strided_slice %338 {offsets = [0, 96], sizes = [2, 32], strides = [1, 1]} : vector<2x128xf32> to vector<2x32xf32>
    %348 = math.tanh %347 : vector<2x32xf32>
    %349 = vector.extract_strided_slice %346 {offsets = [0, 0], sizes = [2, 32], strides = [1, 1]} : vector<2x96xf32> to vector<2x32xf32>
    %350 = vector.extract_strided_slice %346 {offsets = [0, 32], sizes = [2, 32], strides = [1, 1]} : vector<2x96xf32> to vector<2x32xf32>
    %351 = vector.extract_strided_slice %346 {offsets = [0, 64], sizes = [2, 32], strides = [1, 1]} : vector<2x96xf32> to vector<2x32xf32>
    %352 = arith.mulf %350, %311 : vector<2x32xf32>
    %353 = arith.mulf %349, %348 : vector<2x32xf32>
    %354 = arith.addf %352, %353 : vector<2x32xf32>
    %355 = math.tanh %354 : vector<2x32xf32>
    %356 = arith.mulf %351, %355 : vector<2x32xf32>
    %c0_86 = arith.constant 0 : index
    %c0_87 = arith.constant 0 : index
    %357 = vector.load %arg7[%c0_86, %c0_87] : memref<32x16xf32, #tpu.memory_space<vmem>>, vector<32x16xf32>
    %cst_88 = arith.constant dense<0.000000e+00> : vector<2x16xf32>
    %358 = tpu.matmul %356, %357, %cst_88 {dimension_numbers = #tpu.dot_dimension_numbers<[1], [0], [0], [1], [0, 0, 1, 1], [], []>} : vector<2x32xf32>, vector<32x16xf32>, vector<2x16xf32> -> vector<2x16xf32>
    %c0_89 = arith.constant 0 : index
    %c0_90 = arith.constant 0 : index
    %359 = vector.load %arg8[%c0_89, %c0_90] : memref<1x16xf32, #tpu.memory_space<vmem>>, vector<1x16xf32>
    %360 = vector.broadcast %359 : vector<1x16xf32> to vector<2x16xf32>
    %361 = arith.addf %358, %360 : vector<2x16xf32>
    %c0_91 = arith.constant 0 : index
    %c0_92 = arith.constant 0 : index
    %362 = vector.load %arg9[%c0_91, %c0_92] : memref<16x1xf32, #tpu.memory_space<vmem>>, vector<16x1xf32>
    %cst_93 = arith.constant dense<0.000000e+00> : vector<2x1xf32>
    %363 = tpu.matmul %361, %362, %cst_93 {dimension_numbers = #tpu.dot_dimension_numbers<[1], [0], [0], [1], [0, 0, 1, 1], [], []>} : vector<2x16xf32>, vector<16x1xf32>, vector<2x1xf32> -> vector<2x1xf32>
    %c0_94 = arith.constant 0 : index
    %c0_95 = arith.constant 0 : index
    %364 = vector.load %arg10[%c0_94, %c0_95] : memref<1x1xf32, #tpu.memory_space<vmem>>, vector<1x1xf32>
    %365 = vector.broadcast %364 : vector<1x1xf32> to vector<2x1xf32>
    %366 = arith.addf %363, %365 : vector<2x1xf32>
    %c0_96 = arith.constant 0 : index
    %c0_97 = arith.constant 0 : index
    %367 = vector.load %arg11[%c0_96, %c0_97] : memref<2x1xf32, #tpu.memory_space<vmem>>, vector<2x1xf32>
    tpu.vector_store %arg11[%c0_96, %c0_97], %366 {strides = array<i32>} : memref<2x1xf32, #tpu.memory_space<vmem>>, vector<2x1xf32>,
    return
  }
}

</mosaic_0001>

<llo_original>
// kernel: tpu_custom_call.1
$region0: #{tpu_custom_call.1}
  #allocation0 [shape = 'u32[]', space=smem, size = 0x4, offset = 0x4, fixed_abs, tag = 'smem constant byte address 0x4 - core index']
  #allocation1 [shape = 'u32[72,128]{1,0:T(1,128)}', space=vmem, size = 0x9000, scoped, tag = 'internal scratch']
  #allocation2 [shape = 'f32[1,1]{1,0:T(1,128)S(1)}', space=vmem, size = 0x200, scoped, tag = 'scoped memory for tpu_custom_call.1']
  %s0 = inlined_call_operand.vmem [shape: f32[16,4], index: 0, kind: input, shape index: {}]
  %s1 = inlined_call_operand.vmem [shape: f32[4,128], index: 1, kind: input, shape index: {}]
  %s2 = inlined_call_operand.vmem [shape: f32[32,128], index: 2, kind: input, shape index: {}]
  %s3 = inlined_call_operand.vmem [shape: f32[1,128], index: 3, kind: input, shape index: {}]
  %s4 = inlined_call_operand.vmem [shape: f32[32,128], index: 4, kind: input, shape index: {}]
  %s5 = inlined_call_operand.hbm [shape: f32[32,128], index: 5, kind: input, shape index: {}]
  %s6 = inlined_call_operand.vmem [shape: f32[1,128], index: 6, kind: input, shape index: {}]
  %s7 = inlined_call_operand.vmem [shape: f32[32,16], index: 7, kind: input, shape index: {}]
  %s8 = inlined_call_operand.vmem [shape: f32[1,16], index: 8, kind: input, shape index: {}]
  %s9 = inlined_call_operand.vmem [shape: f32[16,1], index: 9, kind: input, shape index: {}]
  %s10 = inlined_call_operand.<no memory space> [shape: f32[1,1], index: 10, kind: input, shape index: {}]
  %s11 = inlined_call_operand.vmem [shape: f32[2,1], index: 11, kind: output, shape index: {}]
  %s12 = sld [smem:[#allocation0]]
  $region58: #{tpu_custom_call.1} parent=0
    _
  %s14 = ssub.s32 1, %s12
  %s15 = scalar_select 0, %s14, %s12
  %v16 = vstv %s10
  %17 = vst [vmem:[#allocation2] sm:$0x1] %v16
  $region1: #{tpu_custom_call.1} parent=0
    #allocation3 [shape = 'u8[16384]{0}', space=vmem, size = 0x4000, scoped, tag = 'input window, operand 5, single buffered']
    #allocation4 [shape = 's32[1]{0}', space=sflag, size = 0x4, scoped, tag = 'scoped memory for tpu_custom_call.1']
    %18 = vsyncpa [#allocation4], 0
    // Predicated region
    $region2: #{tpu_custom_call.1} parent=1 // pred_check
      _
    $region3: #{tpu_custom_call.1} parent=1 // pred_check_branch
      %20 = sbr.rel (0) target = $region5
    $region4: #{tpu_custom_call.1} parent=1 // pred_region
      _
    $region5: #{tpu_custom_call.1} parent=1 // pred_fallthru
      _
    // Predicated region
    $region6: #{tpu_custom_call.1} parent=1 // pred_check
      _
    $region7: #{tpu_custom_call.1} parent=1 // pred_check_branch
      %22 = sbr.rel (0) target = $region9
    $region8: #{tpu_custom_call.1} parent=1 // pred_region
      _
    $region9: #{tpu_custom_call.1} parent=1 // pred_fallthru
      _
    // Predicated region
    $region10: #{tpu_custom_call.1} parent=1 // pred_check
      _
    $region11: #{tpu_custom_call.1} parent=1 // pred_check_branch
      %24 = sbr.rel (0) target = $region13
    $region12: #{tpu_custom_call.1} parent=1 // pred_region
      _
    $region13: #{tpu_custom_call.1} parent=1 // pred_fallthru
      _
    // Predicated region
    $region14: #{tpu_custom_call.1} parent=1 // pred_check
      _
    $region15: #{tpu_custom_call.1} parent=1 // pred_check_branch
      %26 = sbr.rel (0) target = $region17
    $region16: #{tpu_custom_call.1} parent=1 // pred_region
      _
    $region17: #{tpu_custom_call.1} parent=1 // pred_fallthru
      _
    // Predicated region
    $region18: #{tpu_custom_call.1} parent=1 // pred_check
      _
    $region19: #{tpu_custom_call.1} parent=1 // pred_check_branch
      %28 = sbr.rel (0) target = $region21
    $region20: #{tpu_custom_call.1} parent=1 // pred_region
      _
    $region21: #{tpu_custom_call.1} parent=1 // pred_fallthru
      _
    // Predicated region
    $region22: #{tpu_custom_call.1} parent=1 // pred_check
      _
    $region23: #{tpu_custom_call.1} parent=1 // pred_check_branch
      %30 = sbr.rel (0) target = $region25
    $region24: #{tpu_custom_call.1} parent=1 // pred_region
      %32 = vsyncadd [#allocation4], 0
      %s33 = sshll.u32 %s5, 4
      %s34 = int_to_ptr.hbm [resolvable:$true] %s33
      %s35 = sshll.u32 [#allocation3], 4
      %s36 = int_to_ptr.vmem [resolvable:$true] %s35
      %41 = dma.hbm_to_vmem [thread:$0]  %s34, 512, %s36, [#allocation4], 128, 128, 8
    $region25: #{tpu_custom_call.1} parent=1 // pred_fallthru
      _
    // Predicated region
    $region26: #{tpu_custom_call.1} parent=1 // pred_check
      _
    $region27: #{tpu_custom_call.1} parent=1 // pred_check_branch
      %43 = sbr.rel (0) target = $region29
    $region28: #{tpu_custom_call.1} parent=1 // pred_region
      _
    $region29: #{tpu_custom_call.1} parent=1 // pred_fallthru
      _
    // Predicated region
    $region30: #{tpu_custom_call.1} parent=1 // pred_check
      _
    $region31: #{tpu_custom_call.1} parent=1 // pred_check_branch
      %45 = sbr.rel (0) target = $region33
    $region32: #{tpu_custom_call.1} parent=1 // pred_region
      _
    $region33: #{tpu_custom_call.1} parent=1 // pred_fallthru
      _
    // Predicated region
    $region34: #{tpu_custom_call.1} parent=1 // pred_check
      _
    $region35: #{tpu_custom_call.1} parent=1 // pred_check_branch
      %47 = sbr.rel (0) target = $region37
    $region36: #{tpu_custom_call.1} parent=1 // pred_region
      _
    $region37: #{tpu_custom_call.1} parent=1 // pred_fallthru
      _
    // Predicated region
    $region38: #{tpu_custom_call.1} parent=1 // pred_check
      _
    $region39: #{tpu_custom_call.1} parent=1 // pred_check_branch
      %49 = sbr.rel (0) target = $region41
    $region40: #{tpu_custom_call.1} parent=1 // pred_region
      _
    $region41: #{tpu_custom_call.1} parent=1 // pred_fallthru
      _
    // Predicated region
    $region42: #{tpu_custom_call.1} parent=1 // pred_check
      _
    $region43: #{tpu_custom_call.1} parent=1 // pred_check_branch
      %51 = sbr.rel (0) target = $region45
    $region44: #{tpu_custom_call.1} parent=1 // pred_region
      _
    $region45: #{tpu_custom_call.1} parent=1 // pred_fallthru
      _
    // Predicated region
    $region46: #{tpu_custom_call.1} parent=1 // pred_check
      _
    $region47: #{tpu_custom_call.1} parent=1 // pred_check_branch
      %53 = sbr.rel (0) target = $region49
    $region48: #{tpu_custom_call.1} parent=1 // pred_region
      %55 = dma.done [#allocation4], 512
    $region49: #{tpu_custom_call.1} parent=1 // pred_fallthru
      _
    %v56 = vld [vmem:[%s0] sm:$0xff]
    %v57 = vld [vmem:[%s0 + $0x8] sm:$0xff]
    %v58 = vld [vmem:[%s1] sm:$0xf]
    %v59 = vld [vmem:[%s3] sm:$0x1]
    %v61 = vperm.slane %v59, 0
    %vm63 = vcmask 31744
    %v65 = vsel %vm63, %v56, 0
    %v68 = vsel %vm63, %v57, 0
    %vm70 = vcmask 1043456
    %v72 = vsel %vm70, %v58, 0
    %74 = vmatpush.msra.mxu0 0.0
    %75 = vmatpush.msra.mxu0 0.0
    %76 = vmatpush.msra.mxu0 0.0
    %77 = vmatpush.msra.mxu0 0.0
    %78 = vmatpush.msra.mxu0 0.0
    %79 = vmatpush.msra.mxu0 0.0
    %80 = vmatpush.msra.mxu0 0.0
    %81 = vmatpush.msra.mxu0 0.0
    %82 = vmatpush.msra.mxu0 0.0
    %83 = vmatpush.msra.mxu0 0.0
    %84 = vmatpush.msra.mxu0 0.0
    %85 = vmatpush.msra.mxu0 0.0
    %86 = vmatpush.msra.mxu0 0.0
    %87 = vmatpush.msra.mxu0 0.0
    %88 = vmatpush.msra.mxu0 0.0
    %89 = vmatpush.msra.mxu0 %v72
    %90 = vmatmul.f32.gmra.mxu0 %v65
    %v91 = vpop.f32.mrf.mxu0
    %v92 = vadd.f32 %v61, %v91
    %93 = vmatmul.f32.gmra.mxu0 %v68
    %v94 = vpop.f32.mrf.mxu0
    %v95 = vadd.f32 %v61, %v94
    %96 = vdwg.mxu0
    %v97 = vld [vmem:[%s2] sm:$0xff]
    %v98 = vld [vmem:[%s2 + $0x8] sm:$0xff]
    %v99 = vld [vmem:[%s2 + $0x10] sm:$0xff]
    %v100 = vld [vmem:[%s2 + $0x18] sm:$0xff]
    %v101 = vld [vmem:[%s4] sm:$0xff]
    %v102 = vld [vmem:[%s4 + $0x8] sm:$0xff]
    %v103 = vld [vmem:[%s4 + $0x10] sm:$0xff]
    %v104 = vld [vmem:[%s4 + $0x18] sm:$0xff]
    %v105 = vld [vmem:[#allocation3] sm:$0xff]
    %v106 = vld [vmem:[#allocation3 + $0x8] sm:$0xff]
    %v107 = vld [vmem:[#allocation3 + $0x10] sm:$0xff]
    %v108 = vld [vmem:[#allocation3 + $0x18] sm:$0xff]
    %v109 = vld [vmem:[%s6] sm:$0x1]
    %v111 = vperm.slane %v109, 0
    %vm113 = vcmask 261120
    %v115 = vsel %vm113, 0.0, 0
    %117 = vmatpush.msra.mxu0 0.0
    %118 = vmatpush.msra.mxu0 0.0
    %119 = vmatpush.msra.mxu0 0.0
    %120 = vmatpush.msra.mxu0 0.0
    %121 = vmatpush.msra.mxu0 0.0
    %122 = vmatpush.msra.mxu0 0.0
    %123 = vmatpush.msra.mxu0 0.0
    %124 = vmatpush.msra.mxu0 0.0
    %125 = vmatpush.msra.mxu0 0.0
    %126 = vmatpush.msra.mxu0 0.0
    %127 = vmatpush.msra.mxu0 0.0
    %128 = vmatpush.msra.mxu0 0.0
    %129 = vmatpush.msra.mxu0 %v100
    %130 = vmatpush.msra.mxu0 %v99
    %131 = vmatpush.msra.mxu0 %v98
    %132 = vmatpush.msra.mxu0 %v97
    %133 = vmatmul.f32.gmra.mxu0 %v115
    %v134 = vpop.f32.mrf.mxu0
    %v135 = vadd.f32 0.0, %v134
    %136 = vdwg.mxu0
    %v137 = vadd.f32 %v92, %v135
    %v138 = vmul.f32 %v137, 0.5
    %v139 = vtanh.pop %v138
    %v140 = vadd.f32 %v139, 1.0
    %v141 = vmul.f32 %v140, 0.5
    %v142 = vtanh.pop %v137
    %v143 = vmul.f32 %v141, 0.0
    %145 = vrot.lane.b32.xlu0 %v142, 32
    %v146 = vpop.permute.xlu0 %145
    %v148 = vmul.f32 %v141, %v146
    %150 = vrot.lane.b32.xlu0 %v148, 32
    %v151 = vpop.permute.xlu0 %150
    %v153 = vadd.f32 %v143, %v151
    %v154 = vtanh.pop %v153
    %156 = vrot.lane.b32.xlu0 %v154, 32
    %v157 = vpop.permute.xlu0 %156
    %v159 = vmul.f32 %v141, %v157
    %160 = vmatpush.msra.mxu0 0.0
    %161 = vmatpush.msra.mxu0 0.0
    %162 = vmatpush.msra.mxu0 0.0
    %163 = vmatpush.msra.mxu0 0.0
    %164 = vmatpush.msra.mxu0 0.0
    %165 = vmatpush.msra.mxu0 0.0
    %166 = vmatpush.msra.mxu0 0.0
    %167 = vmatpush.msra.mxu0 0.0
    %168 = vmatpush.msra.mxu0 0.0
    %169 = vmatpush.msra.mxu0 0.0
    %170 = vmatpush.msra.mxu0 0.0
    %171 = vmatpush.msra.mxu0 0.0
    %172 = vmatpush.msra.mxu0 %v108
    %173 = vmatpush.msra.mxu0 %v107
    %174 = vmatpush.msra.mxu0 %v106
    %175 = vmatpush.msra.mxu0 %v105
    %176 = vmatmul.f32.gmra.mxu0 %v115
    %v177 = vpop.f32.mrf.mxu0
    %v178 = vadd.f32 %v111, %v177
    %179 = vdwg.mxu0
    %181 = vrot.lane.b32.xlu0 %v159, 64
    %v182 = vpop.permute.xlu0 %181
    %v183 = vsel %vm113, %v182, 0
    %185 = vmatpush.msra.mxu0 0.0
    %186 = vmatpush.msra.mxu0 0.0
    %187 = vmatpush.msra.mxu0 0.0
    %188 = vmatpush.msra.mxu0 0.0
    %189 = vmatpush.msra.mxu0 0.0
    %190 = vmatpush.msra.mxu0 0.0
    %191 = vmatpush.msra.mxu0 0.0
    %192 = vmatpush.msra.mxu0 0.0
    %193 = vmatpush.msra.mxu0 0.0
    %194 = vmatpush.msra.mxu0 0.0
    %195 = vmatpush.msra.mxu0 0.0
    %196 = vmatpush.msra.mxu0 0.0
    %197 = vmatpush.msra.mxu0 %v104
    %198 = vmatpush.msra.mxu0 %v103
    %199 = vmatpush.msra.mxu0 %v102
    %200 = vmatpush.msra.mxu0 %v101
    %201 = vmatmul.f32.gmra.mxu0 %v183
    %v202 = vpop.f32.mrf.mxu0
    %v203 = vadd.f32 %v178, %v202
    %204 = vdwg.mxu0
    %v205 = vmul.f32 %v203, 0.5
    %v206 = vtanh.pop %v205
    %v207 = vadd.f32 %v206, 1.0
    %v208 = vmul.f32 %v207, 0.5
    %v209 = vtanh.pop %v203
    %v210 = vmul.f32 %v208, 0.0
    %212 = vrot.lane.b32.xlu0 %v209, 32
    %v213 = vpop.permute.xlu0 %212
    %v215 = vmul.f32 %v208, %v213
    %217 = vrot.lane.b32.xlu0 %v215, 32
    %v218 = vpop.permute.xlu0 %217
    %v220 = vadd.f32 %v210, %v218
    %v221 = vtanh.pop %v220
    %223 = vrot.lane.b32.xlu0 %v221, 32
    %v224 = vpop.permute.xlu0 %223
    %v226 = vmul.f32 %v208, %v224
    %227 = vmatpush.msra.mxu0 0.0
    %228 = vmatpush.msra.mxu0 0.0
    %229 = vmatpush.msra.mxu0 0.0
    %230 = vmatpush.msra.mxu0 0.0
    %231 = vmatpush.msra.mxu0 0.0
    %232 = vmatpush.msra.mxu0 0.0
    %233 = vmatpush.msra.mxu0 0.0
    %234 = vmatpush.msra.mxu0 0.0
    %235 = vmatpush.msra.mxu0 0.0
    %236 = vmatpush.msra.mxu0 0.0
    %237 = vmatpush.msra.mxu0 0.0
    %238 = vmatpush.msra.mxu0 0.0
    %239 = vmatpush.msra.mxu0 %v100
    %240 = vmatpush.msra.mxu0 %v99
    %241 = vmatpush.msra.mxu0 %v98
    %242 = vmatpush.msra.mxu0 %v97
    %243 = vmatmul.f32.gmra.mxu0 %v183
    %v244 = vpop.f32.mrf.mxu0
    %v245 = vadd.f32 0.0, %v244
    %246 = vdwg.mxu0
    %v248 = vrot.slane %v245, 6
    %v250 = vadd.f32 %v92, %v248
    %v251 = vmul.f32 %v250, 0.5
    %v252 = vtanh.pop %v251
    %v253 = vadd.f32 %v252, 1.0
    %v254 = vmul.f32 %v253, 0.5
    %v255 = vtanh.pop %v250
    %v257 = vrot.slane %v153, 6
    %v259 = vmul.f32 %v254, %v257
    %261 = vrot.lane.b32.xlu0 %v255, 32
    %v262 = vpop.permute.xlu0 %261
    %v264 = vmul.f32 %v254, %v262
    %266 = vrot.lane.b32.xlu0 %v264, 32
    %v267 = vpop.permute.xlu0 %266
    %v269 = vadd.f32 %v259, %v267
    %v270 = vtanh.pop %v269
    %272 = vrot.lane.b32.xlu0 %v270, 32
    %v273 = vpop.permute.xlu0 %272
    %v275 = vmul.f32 %v254, %v273
    %277 = vrot.lane.b32.xlu0 %v226, 64
    %v278 = vpop.permute.xlu0 %277
    %v279 = vsel %vm113, %v278, 0
    %281 = vmatpush.msra.mxu0 0.0
    %282 = vmatpush.msra.mxu0 0.0
    %283 = vmatpush.msra.mxu0 0.0
    %284 = vmatpush.msra.mxu0 0.0
    %285 = vmatpush.msra.mxu0 0.0
    %286 = vmatpush.msra.mxu0 0.0
    %287 = vmatpush.msra.mxu0 0.0
    %288 = vmatpush.msra.mxu0 0.0
    %289 = vmatpush.msra.mxu0 0.0
    %290 = vmatpush.msra.mxu0 0.0
    %291 = vmatpush.msra.mxu0 0.0
    %292 = vmatpush.msra.mxu0 0.0
    %293 = vmatpush.msra.mxu0 %v108
    %294 = vmatpush.msra.mxu0 %v107
    %295 = vmatpush.msra.mxu0 %v106
    %296 = vmatpush.msra.mxu0 %v105
    %297 = vmatmul.f32.gmra.mxu0 %v279
    %v298 = vpop.f32.mrf.mxu0
    %v299 = vadd.f32 %v111, %v298
    %300 = vdwg.mxu0
    %v302 = vrot.slane %v275, 2
    %303 = vrot.lane.b32.xlu0 %v302, 64
    %v304 = vpop.permute.xlu0 %303
    %v305 = vsel %vm113, %v304, 0
    %307 = vmatpush.msra.mxu0 0.0
    %308 = vmatpush.msra.mxu0 0.0
    %309 = vmatpush.msra.mxu0 0.0
    %310 = vmatpush.msra.mxu0 0.0
    %311 = vmatpush.msra.mxu0 0.0
    %312 = vmatpush.msra.mxu0 0.0
    %313 = vmatpush.msra.mxu0 0.0
    %314 = vmatpush.msra.mxu0 0.0
    %315 = vmatpush.msra.mxu0 0.0
    %316 = vmatpush.msra.mxu0 0.0
    %317 = vmatpush.msra.mxu0 0.0
    %318 = vmatpush.msra.mxu0 0.0
    %319 = vmatpush.msra.mxu0 %v104
    %320 = vmatpush.msra.mxu0 %v103
    %321 = vmatpush.msra.mxu0 %v102
    %322 = vmatpush.msra.mxu0 %v101
    %323 = vmatmul.f32.gmra.mxu0 %v305
    %v324 = vpop.f32.mrf.mxu0
    %v325 = vadd.f32 %v299, %v324
    %326 = vdwg.mxu0
    %v327 = vmul.f32 %v325, 0.5
    %v328 = vtanh.pop %v327
    %v329 = vadd.f32 %v328, 1.0
    %v330 = vmul.f32 %v329, 0.5
    %v331 = vtanh.pop %v325
    %v332 = vmul.f32 %v330, %v220
    %334 = vrot.lane.b32.xlu0 %v331, 32
    %v335 = vpop.permute.xlu0 %334
    %v337 = vmul.f32 %v330, %v335
    %339 = vrot.lane.b32.xlu0 %v337, 32
    %v340 = vpop.permute.xlu0 %339
    %v342 = vadd.f32 %v332, %v340
    %v343 = vtanh.pop %v342
    %345 = vrot.lane.b32.xlu0 %v343, 32
    %v346 = vpop.permute.xlu0 %345
    %v348 = vmul.f32 %v330, %v346
    %349 = vmatpush.msra.mxu0 0.0
    %350 = vmatpush.msra.mxu0 0.0
    %351 = vmatpush.msra.mxu0 0.0
    %352 = vmatpush.msra.mxu0 0.0
    %353 = vmatpush.msra.mxu0 0.0
    %354 = vmatpush.msra.mxu0 0.0
    %355 = vmatpush.msra.mxu0 0.0
    %356 = vmatpush.msra.mxu0 0.0
    %357 = vmatpush.msra.mxu0 0.0
    %358 = vmatpush.msra.mxu0 0.0
    %359 = vmatpush.msra.mxu0 0.0
    %360 = vmatpush.msra.mxu0 0.0
    %361 = vmatpush.msra.mxu0 %v100
    %362 = vmatpush.msra.mxu0 %v99
    %363 = vmatpush.msra.mxu0 %v98
    %364 = vmatpush.msra.mxu0 %v97
    %365 = vmatmul.f32.gmra.mxu0 %v305
    %v366 = vpop.f32.mrf.mxu0
    %v367 = vadd.f32 0.0, %v366
    %368 = vdwg.mxu0
    %v370 = vrot.slane %v367, 4
    %v372 = vadd.f32 %v92, %v370
    %v373 = vmul.f32 %v372, 0.5
    %v374 = vtanh.pop %v373
    %v375 = vadd.f32 %v374, 1.0
    %v376 = vmul.f32 %v375, 0.5
    %v377 = vtanh.pop %v372
    %v379 = vrot.slane %v269, 6
    %v381 = vmul.f32 %v376, %v379
    %383 = vrot.lane.b32.xlu0 %v377, 32
    %v384 = vpop.permute.xlu0 %383
    %v386 = vmul.f32 %v376, %v384
    %388 = vrot.lane.b32.xlu0 %v386, 32
    %v389 = vpop.permute.xlu0 %388
    %v391 = vadd.f32 %v381, %v389
    %v392 = vtanh.pop %v391
    %394 = vrot.lane.b32.xlu0 %v392, 32
    %v395 = vpop.permute.xlu0 %394
    %v397 = vmul.f32 %v376, %v395
    %399 = vrot.lane.b32.xlu0 %v348, 64
    %v400 = vpop.permute.xlu0 %399
    %v401 = vsel %vm113, %v400, 0
    %403 = vmatpush.msra.mxu0 0.0
    %404 = vmatpush.msra.mxu0 0.0
    %405 = vmatpush.msra.mxu0 0.0
    %406 = vmatpush.msra.mxu0 0.0
    %407 = vmatpush.msra.mxu0 0.0
    %408 = vmatpush.msra.mxu0 0.0
    %409 = vmatpush.msra.mxu0 0.0
    %410 = vmatpush.msra.mxu0 0.0
    %411 = vmatpush.msra.mxu0 0.0
    %412 = vmatpush.msra.mxu0 0.0
    %413 = vmatpush.msra.mxu0 0.0
    %414 = vmatpush.msra.mxu0 0.0
    %415 = vmatpush.msra.mxu0 %v108
    %416 = vmatpush.msra.mxu0 %v107
    %417 = vmatpush.msra.mxu0 %v106
    %418 = vmatpush.msra.mxu0 %v105
    %419 = vmatmul.f32.gmra.mxu0 %v401
    %v420 = vpop.f32.mrf.mxu0
    %v421 = vadd.f32 %v111, %v420
    %422 = vdwg.mxu0
    %v424 = vrot.slane %v397, 4
    %425 = vrot.lane.b32.xlu0 %v424, 64
    %v426 = vpop.permute.xlu0 %425
    %v427 = vsel %vm113, %v426, 0
    %429 = vmatpush.msra.mxu0 0.0
    %430 = vmatpush.msra.mxu0 0.0
    %431 = vmatpush.msra.mxu0 0.0
    %432 = vmatpush.msra.mxu0 0.0
    %433 = vmatpush.msra.mxu0 0.0
    %434 = vmatpush.msra.mxu0 0.0
    %435 = vmatpush.msra.mxu0 0.0
    %436 = vmatpush.msra.mxu0 0.0
    %437 = vmatpush.msra.mxu0 0.0
    %438 = vmatpush.msra.mxu0 0.0
    %439 = vmatpush.msra.mxu0 0.0
    %440 = vmatpush.msra.mxu0 0.0
    %441 = vmatpush.msra.mxu0 %v104
    %442 = vmatpush.msra.mxu0 %v103
    %443 = vmatpush.msra.mxu0 %v102
    %444 = vmatpush.msra.mxu0 %v101
    %445 = vmatmul.f32.gmra.mxu0 %v427
    %v446 = vpop.f32.mrf.mxu0
    %v447 = vadd.f32 %v421, %v446
    %448 = vdwg.mxu0
    %v449 = vmul.f32 %v447, 0.5
    %v450 = vtanh.pop %v449
    %v451 = vadd.f32 %v450, 1.0
    %v452 = vmul.f32 %v451, 0.5
    %v453 = vtanh.pop %v447
    %v454 = vmul.f32 %v452, %v342
    %456 = vrot.lane.b32.xlu0 %v453, 32
    %v457 = vpop.permute.xlu0 %456
    %v459 = vmul.f32 %v452, %v457
    %461 = vrot.lane.b32.xlu0 %v459, 32
    %v462 = vpop.permute.xlu0 %461
    %v464 = vadd.f32 %v454, %v462
    %v465 = vtanh.pop %v464
    %467 = vrot.lane.b32.xlu0 %v465, 32
    %v468 = vpop.permute.xlu0 %467
    %v470 = vmul.f32 %v452, %v468
    %471 = vmatpush.msra.mxu0 0.0
    %472 = vmatpush.msra.mxu0 0.0
    %473 = vmatpush.msra.mxu0 0.0
    %474 = vmatpush.msra.mxu0 0.0
    %475 = vmatpush.msra.mxu0 0.0
    %476 = vmatpush.msra.mxu0 0.0
    %477 = vmatpush.msra.mxu0 0.0
    %478 = vmatpush.msra.mxu0 0.0
    %479 = vmatpush.msra.mxu0 0.0
    %480 = vmatpush.msra.mxu0 0.0
    %481 = vmatpush.msra.mxu0 0.0
    %482 = vmatpush.msra.mxu0 0.0
    %483 = vmatpush.msra.mxu0 %v100
    %484 = vmatpush.msra.mxu0 %v99
    %485 = vmatpush.msra.mxu0 %v98
    %486 = vmatpush.msra.mxu0 %v97
    %487 = vmatmul.f32.gmra.mxu0 %v427
    %v488 = vpop.f32.mrf.mxu0
    %v489 = vadd.f32 0.0, %v488
    %490 = vdwg.mxu0
    %v492 = vrot.slane %v489, 2
    %v494 = vadd.f32 %v92, %v492
    %v495 = vmul.f32 %v494, 0.5
    %v496 = vtanh.pop %v495
    %v497 = vadd.f32 %v496, 1.0
    %v498 = vmul.f32 %v497, 0.5
    %v499 = vtanh.pop %v494
    %v501 = vrot.slane %v391, 6
    %v503 = vmul.f32 %v498, %v501
    %505 = vrot.lane.b32.xlu0 %v499, 32
    %v506 = vpop.permute.xlu0 %505
    %v508 = vmul.f32 %v498, %v506
    %510 = vrot.lane.b32.xlu0 %v508, 32
    %v511 = vpop.permute.xlu0 %510
    %v513 = vadd.f32 %v503, %v511
    %v514 = vtanh.pop %v513
    %516 = vrot.lane.b32.xlu0 %v514, 32
    %v517 = vpop.permute.xlu0 %516
    %v519 = vmul.f32 %v498, %v517
    %521 = vrot.lane.b32.xlu0 %v470, 64
    %v522 = vpop.permute.xlu0 %521
    %v523 = vsel %vm113, %v522, 0
    %525 = vmatpush.msra.mxu0 0.0
    %526 = vmatpush.msra.mxu0 0.0
    %527 = vmatpush.msra.mxu0 0.0
    %528 = vmatpush.msra.mxu0 0.0
    %529 = vmatpush.msra.mxu0 0.0
    %530 = vmatpush.msra.mxu0 0.0
    %531 = vmatpush.msra.mxu0 0.0
    %532 = vmatpush.msra.mxu0 0.0
    %533 = vmatpush.msra.mxu0 0.0
    %534 = vmatpush.msra.mxu0 0.0
    %535 = vmatpush.msra.mxu0 0.0
    %536 = vmatpush.msra.mxu0 0.0
    %537 = vmatpush.msra.mxu0 %v108
    %538 = vmatpush.msra.mxu0 %v107
    %539 = vmatpush.msra.mxu0 %v106
    %540 = vmatpush.msra.mxu0 %v105
    %541 = vmatmul.f32.gmra.mxu0 %v523
    %v542 = vpop.f32.mrf.mxu0
    %v543 = vadd.f32 %v111, %v542
    %544 = vdwg.mxu0
    %v546 = vrot.slane %v519, 6
    %547 = vrot.lane.b32.xlu0 %v546, 64
    %v548 = vpop.permute.xlu0 %547
    %v549 = vsel %vm113, %v548, 0
    %551 = vmatpush.msra.mxu0 0.0
    %552 = vmatpush.msra.mxu0 0.0
    %553 = vmatpush.msra.mxu0 0.0
    %554 = vmatpush.msra.mxu0 0.0
    %555 = vmatpush.msra.mxu0 0.0
    %556 = vmatpush.msra.mxu0 0.0
    %557 = vmatpush.msra.mxu0 0.0
    %558 = vmatpush.msra.mxu0 0.0
    %559 = vmatpush.msra.mxu0 0.0
    %560 = vmatpush.msra.mxu0 0.0
    %561 = vmatpush.msra.mxu0 0.0
    %562 = vmatpush.msra.mxu0 0.0
    %563 = vmatpush.msra.mxu0 %v104
    %564 = vmatpush.msra.mxu0 %v103
    %565 = vmatpush.msra.mxu0 %v102
    %566 = vmatpush.msra.mxu0 %v101
    %567 = vmatmul.f32.gmra.mxu0 %v549
    %v568 = vpop.f32.mrf.mxu0
    %v569 = vadd.f32 %v543, %v568
    %570 = vdwg.mxu0
    %v571 = vmul.f32 %v569, 0.5
    %v572 = vtanh.pop %v571
    %v573 = vadd.f32 %v572, 1.0
    %v574 = vmul.f32 %v573, 0.5
    %v575 = vtanh.pop %v569
    %v576 = vmul.f32 %v574, %v464
    %578 = vrot.lane.b32.xlu0 %v575, 32
    %v579 = vpop.permute.xlu0 %578
    %v581 = vmul.f32 %v574, %v579
    %583 = vrot.lane.b32.xlu0 %v581, 32
    %v584 = vpop.permute.xlu0 %583
    %v586 = vadd.f32 %v576, %v584
    %v587 = vtanh.pop %v586
    %589 = vrot.lane.b32.xlu0 %v587, 32
    %v590 = vpop.permute.xlu0 %589
    %v592 = vmul.f32 %v574, %v590
    %593 = vmatpush.msra.mxu0 0.0
    %594 = vmatpush.msra.mxu0 0.0
    %595 = vmatpush.msra.mxu0 0.0
    %596 = vmatpush.msra.mxu0 0.0
    %597 = vmatpush.msra.mxu0 0.0
    %598 = vmatpush.msra.mxu0 0.0
    %599 = vmatpush.msra.mxu0 0.0
    %600 = vmatpush.msra.mxu0 0.0
    %601 = vmatpush.msra.mxu0 0.0
    %602 = vmatpush.msra.mxu0 0.0
    %603 = vmatpush.msra.mxu0 0.0
    %604 = vmatpush.msra.mxu0 0.0
    %605 = vmatpush.msra.mxu0 %v100
    %606 = vmatpush.msra.mxu0 %v99
    %607 = vmatpush.msra.mxu0 %v98
    %608 = vmatpush.msra.mxu0 %v97
    %609 = vmatmul.f32.gmra.mxu0 %v549
    %v610 = vpop.f32.mrf.mxu0
    %v611 = vadd.f32 0.0, %v610
    %612 = vdwg.mxu0
    %v613 = vadd.f32 %v95, %v611
    %v614 = vmul.f32 %v613, 0.5
    %v615 = vtanh.pop %v614
    %v616 = vadd.f32 %v615, 1.0
    %v617 = vmul.f32 %v616, 0.5
    %v618 = vtanh.pop %v613
    %v620 = vrot.slane %v513, 6
    %v622 = vmul.f32 %v617, %v620
    %624 = vrot.lane.b32.xlu0 %v618, 32
    %v625 = vpop.permute.xlu0 %624
    %v627 = vmul.f32 %v617, %v625
    %629 = vrot.lane.b32.xlu0 %v627, 32
    %v630 = vpop.permute.xlu0 %629
    %v632 = vadd.f32 %v622, %v630
    %v633 = vtanh.pop %v632
    %635 = vrot.lane.b32.xlu0 %v633, 32
    %v636 = vpop.permute.xlu0 %635
    %v638 = vmul.f32 %v617, %v636
    %640 = vrot.lane.b32.xlu0 %v592, 64
    %v641 = vpop.permute.xlu0 %640
    %v642 = vsel %vm113, %v641, 0
    %644 = vmatpush.msra.mxu0 0.0
    %645 = vmatpush.msra.mxu0 0.0
    %646 = vmatpush.msra.mxu0 0.0
    %647 = vmatpush.msra.mxu0 0.0
    %648 = vmatpush.msra.mxu0 0.0
    %649 = vmatpush.msra.mxu0 0.0
    %650 = vmatpush.msra.mxu0 0.0
    %651 = vmatpush.msra.mxu0 0.0
    %652 = vmatpush.msra.mxu0 0.0
    %653 = vmatpush.msra.mxu0 0.0
    %654 = vmatpush.msra.mxu0 0.0
    %655 = vmatpush.msra.mxu0 0.0
    %656 = vmatpush.msra.mxu0 %v108
    %657 = vmatpush.msra.mxu0 %v107
    %658 = vmatpush.msra.mxu0 %v106
    %659 = vmatpush.msra.mxu0 %v105
    %660 = vmatmul.f32.gmra.mxu0 %v642
    %v661 = vpop.f32.mrf.mxu0
    %v662 = vadd.f32 %v111, %v661
    %663 = vdwg.mxu0
    %665 = vrot.lane.b32.xlu0 %v638, 64
    %v666 = vpop.permute.xlu0 %665
    %v667 = vsel %vm113, %v666, 0
    %669 = vmatpush.msra.mxu0 0.0
    %670 = vmatpush.msra.mxu0 0.0
    %671 = vmatpush.msra.mxu0 0.0
    %672 = vmatpush.msra.mxu0 0.0
    %673 = vmatpush.msra.mxu0 0.0
    %674 = vmatpush.msra.mxu0 0.0
    %675 = vmatpush.msra.mxu0 0.0
    %676 = vmatpush.msra.mxu0 0.0
    %677 = vmatpush.msra.mxu0 0.0
    %678 = vmatpush.msra.mxu0 0.0
    %679 = vmatpush.msra.mxu0 0.0
    %680 = vmatpush.msra.mxu0 0.0
    %681 = vmatpush.msra.mxu0 %v104
    %682 = vmatpush.msra.mxu0 %v103
    %683 = vmatpush.msra.mxu0 %v102
    %684 = vmatpush.msra.mxu0 %v101
    %685 = vmatmul.f32.gmra.mxu0 %v667
    %v686 = vpop.f32.mrf.mxu0
    %v687 = vadd.f32 %v662, %v686
    %688 = vdwg.mxu0
    %v689 = vmul.f32 %v687, 0.5
    %v690 = vtanh.pop %v689
    %v691 = vadd.f32 %v690, 1.0
    %v692 = vmul.f32 %v691, 0.5
    %v693 = vtanh.pop %v687
    %v694 = vmul.f32 %v692, %v586
    %696 = vrot.lane.b32.xlu0 %v693, 32
    %v697 = vpop.permute.xlu0 %696
    %v699 = vmul.f32 %v692, %v697
    %701 = vrot.lane.b32.xlu0 %v699, 32
    %v702 = vpop.permute.xlu0 %701
    %v704 = vadd.f32 %v694, %v702
    %v705 = vtanh.pop %v704
    %707 = vrot.lane.b32.xlu0 %v705, 32
    %v708 = vpop.permute.xlu0 %707
    %v710 = vmul.f32 %v692, %v708
    %711 = vmatpush.msra.mxu0 0.0
    %712 = vmatpush.msra.mxu0 0.0
    %713 = vmatpush.msra.mxu0 0.0
    %714 = vmatpush.msra.mxu0 0.0
    %715 = vmatpush.msra.mxu0 0.0
    %716 = vmatpush.msra.mxu0 0.0
    %717 = vmatpush.msra.mxu0 0.0
    %718 = vmatpush.msra.mxu0 0.0
    %719 = vmatpush.msra.mxu0 0.0
    %720 = vmatpush.msra.mxu0 0.0
    %721 = vmatpush.msra.mxu0 0.0
    %722 = vmatpush.msra.mxu0 0.0
    %723 = vmatpush.msra.mxu0 %v100
    %724 = vmatpush.msra.mxu0 %v99
    %725 = vmatpush.msra.mxu0 %v98
    %726 = vmatpush.msra.mxu0 %v97
    %727 = vmatmul.f32.gmra.mxu0 %v667
    %v728 = vpop.f32.mrf.mxu0
    %v729 = vadd.f32 0.0, %v728
    %730 = vdwg.mxu0
    %v732 = vrot.slane %v729, 6
    %v734 = vadd.f32 %v95, %v732
    %v735 = vmul.f32 %v734, 0.5
    %v736 = vtanh.pop %v735
    %v737 = vadd.f32 %v736, 1.0
    %v738 = vmul.f32 %v737, 0.5
    %v739 = vtanh.pop %v734
    %v741 = vrot.slane %v632, 6
    %v743 = vmul.f32 %v738, %v741
    %745 = vrot.lane.b32.xlu0 %v739, 32
    %v746 = vpop.permute.xlu0 %745
    %v748 = vmul.f32 %v738, %v746
    %750 = vrot.lane.b32.xlu0 %v748, 32
    %v751 = vpop.permute.xlu0 %750
    %v753 = vadd.f32 %v743, %v751
    %v754 = vtanh.pop %v753
    %756 = vrot.lane.b32.xlu0 %v754, 32
    %v757 = vpop.permute.xlu0 %756
    %v759 = vmul.f32 %v738, %v757
    %761 = vrot.lane.b32.xlu0 %v710, 64
    %v762 = vpop.permute.xlu0 %761
    %v763 = vsel %vm113, %v762, 0
    %765 = vmatpush.msra.mxu0 0.0
    %766 = vmatpush.msra.mxu0 0.0
    %767 = vmatpush.msra.mxu0 0.0
    %768 = vmatpush.msra.mxu0 0.0
    %769 = vmatpush.msra.mxu0 0.0
    %770 = vmatpush.msra.mxu0 0.0
    %771 = vmatpush.msra.mxu0 0.0
    %772 = vmatpush.msra.mxu0 0.0
    %773 = vmatpush.msra.mxu0 0.0
    %774 = vmatpush.msra.mxu0 0.0
    %775 = vmatpush.msra.mxu0 0.0
    %776 = vmatpush.msra.mxu0 0.0
    %777 = vmatpush.msra.mxu0 %v108
    %778 = vmatpush.msra.mxu0 %v107
    %779 = vmatpush.msra.mxu0 %v106
    %780 = vmatpush.msra.mxu0 %v105
    %781 = vmatmul.f32.gmra.mxu0 %v763
    %v782 = vpop.f32.mrf.mxu0
    %v783 = vadd.f32 %v111, %v782
    %784 = vdwg.mxu0
    %v786 = vrot.slane %v759, 2
    %787 = vrot.lane.b32.xlu0 %v786, 64
    %v788 = vpop.permute.xlu0 %787
    %v789 = vsel %vm113, %v788, 0
    %791 = vmatpush.msra.mxu0 0.0
    %792 = vmatpush.msra.mxu0 0.0
    %793 = vmatpush.msra.mxu0 0.0
    %794 = vmatpush.msra.mxu0 0.0
    %795 = vmatpush.msra.mxu0 0.0
    %796 = vmatpush.msra.mxu0 0.0
    %797 = vmatpush.msra.mxu0 0.0
    %798 = vmatpush.msra.mxu0 0.0
    %799 = vmatpush.msra.mxu0 0.0
    %800 = vmatpush.msra.mxu0 0.0
    %801 = vmatpush.msra.mxu0 0.0
    %802 = vmatpush.msra.mxu0 0.0
    %803 = vmatpush.msra.mxu0 %v104
    %804 = vmatpush.msra.mxu0 %v103
    %805 = vmatpush.msra.mxu0 %v102
    %806 = vmatpush.msra.mxu0 %v101
    %807 = vmatmul.f32.gmra.mxu0 %v789
    %v808 = vpop.f32.mrf.mxu0
    %v809 = vadd.f32 %v783, %v808
    %810 = vdwg.mxu0
    %v811 = vmul.f32 %v809, 0.5
    %v812 = vtanh.pop %v811
    %v813 = vadd.f32 %v812, 1.0
    %v814 = vmul.f32 %v813, 0.5
    %v815 = vtanh.pop %v809
    %v816 = vmul.f32 %v814, %v704
    %818 = vrot.lane.b32.xlu0 %v815, 32
    %v819 = vpop.permute.xlu0 %818
    %v821 = vmul.f32 %v814, %v819
    %823 = vrot.lane.b32.xlu0 %v821, 32
    %v824 = vpop.permute.xlu0 %823
    %v826 = vadd.f32 %v816, %v824
    %v827 = vtanh.pop %v826
    %829 = vrot.lane.b32.xlu0 %v827, 32
    %v830 = vpop.permute.xlu0 %829
    %v832 = vmul.f32 %v814, %v830
    %833 = vmatpush.msra.mxu0 0.0
    %834 = vmatpush.msra.mxu0 0.0
    %835 = vmatpush.msra.mxu0 0.0
    %836 = vmatpush.msra.mxu0 0.0
    %837 = vmatpush.msra.mxu0 0.0
    %838 = vmatpush.msra.mxu0 0.0
    %839 = vmatpush.msra.mxu0 0.0
    %840 = vmatpush.msra.mxu0 0.0
    %841 = vmatpush.msra.mxu0 0.0
    %842 = vmatpush.msra.mxu0 0.0
    %843 = vmatpush.msra.mxu0 0.0
    %844 = vmatpush.msra.mxu0 0.0
    %845 = vmatpush.msra.mxu0 %v100
    %846 = vmatpush.msra.mxu0 %v99
    %847 = vmatpush.msra.mxu0 %v98
    %848 = vmatpush.msra.mxu0 %v97
    %849 = vmatmul.f32.gmra.mxu0 %v789
    %v850 = vpop.f32.mrf.mxu0
    %v851 = vadd.f32 0.0, %v850
    %852 = vdwg.mxu0
    %v854 = vrot.slane %v851, 4
    %v856 = vadd.f32 %v95, %v854
    %v857 = vmul.f32 %v856, 0.5
    %v858 = vtanh.pop %v857
    %v859 = vadd.f32 %v858, 1.0
    %v860 = vmul.f32 %v859, 0.5
    %v861 = vtanh.pop %v856
    %v863 = vrot.slane %v753, 6
    %v865 = vmul.f32 %v860, %v863
    %867 = vrot.lane.b32.xlu0 %v861, 32
    %v868 = vpop.permute.xlu0 %867
    %v870 = vmul.f32 %v860, %v868
    %872 = vrot.lane.b32.xlu0 %v870, 32
    %v873 = vpop.permute.xlu0 %872
    %v875 = vadd.f32 %v865, %v873
    %v876 = vtanh.pop %v875
    %878 = vrot.lane.b32.xlu0 %v876, 32
    %v879 = vpop.permute.xlu0 %878
    %v881 = vmul.f32 %v860, %v879
    %883 = vrot.lane.b32.xlu0 %v832, 64
    %v884 = vpop.permute.xlu0 %883
    %v885 = vsel %vm113, %v884, 0
    %887 = vmatpush.msra.mxu0 0.0
    %888 = vmatpush.msra.mxu0 0.0
    %889 = vmatpush.msra.mxu0 0.0
    %890 = vmatpush.msra.mxu0 0.0
    %891 = vmatpush.msra.mxu0 0.0
    %892 = vmatpush.msra.mxu0 0.0
    %893 = vmatpush.msra.mxu0 0.0
    %894 = vmatpush.msra.mxu0 0.0
    %895 = vmatpush.msra.mxu0 0.0
    %896 = vmatpush.msra.mxu0 0.0
    %897 = vmatpush.msra.mxu0 0.0
    %898 = vmatpush.msra.mxu0 0.0
    %899 = vmatpush.msra.mxu0 %v108
    %900 = vmatpush.msra.mxu0 %v107
    %901 = vmatpush.msra.mxu0 %v106
    %902 = vmatpush.msra.mxu0 %v105
    %903 = vmatmul.f32.gmra.mxu0 %v885
    %v904 = vpop.f32.mrf.mxu0
    %v905 = vadd.f32 %v111, %v904
    %906 = vdwg.mxu0
    %v908 = vrot.slane %v881, 4
    %909 = vrot.lane.b32.xlu0 %v908, 64
    %v910 = vpop.permute.xlu0 %909
    %v911 = vsel %vm113, %v910, 0
    %913 = vmatpush.msra.mxu0 0.0
    %914 = vmatpush.msra.mxu0 0.0
    %915 = vmatpush.msra.mxu0 0.0
    %916 = vmatpush.msra.mxu0 0.0
    %917 = vmatpush.msra.mxu0 0.0
    %918 = vmatpush.msra.mxu0 0.0
    %919 = vmatpush.msra.mxu0 0.0
    %920 = vmatpush.msra.mxu0 0.0
    %921 = vmatpush.msra.mxu0 0.0
    %922 = vmatpush.msra.mxu0 0.0
    %923 = vmatpush.msra.mxu0 0.0
    %924 = vmatpush.msra.mxu0 0.0
    %925 = vmatpush.msra.mxu0 %v104
    %926 = vmatpush.msra.mxu0 %v103
    %927 = vmatpush.msra.mxu0 %v102
    %928 = vmatpush.msra.mxu0 %v101
    %929 = vmatmul.f32.gmra.mxu0 %v911
    %v930 = vpop.f32.mrf.mxu0
    %v931 = vadd.f32 %v905, %v930
    %932 = vdwg.mxu0
    %v933 = vmul.f32 %v931, 0.5
    %v934 = vtanh.pop %v933
    %v935 = vadd.f32 %v934, 1.0
    %v936 = vmul.f32 %v935, 0.5
    %v937 = vtanh.pop %v931
    %v938 = vmul.f32 %v936, %v826
    %940 = vrot.lane.b32.xlu0 %v937, 32
    %v941 = vpop.permute.xlu0 %940
    %v943 = vmul.f32 %v936, %v941
    %945 = vrot.lane.b32.xlu0 %v943, 32
    %v946 = vpop.permute.xlu0 %945
    %v948 = vadd.f32 %v938, %v946
    %v949 = vtanh.pop %v948
    %951 = vrot.lane.b32.xlu0 %v949, 32
    %v952 = vpop.permute.xlu0 %951
    %v954 = vmul.f32 %v936, %v952
    %955 = vmatpush.msra.mxu0 0.0
    %956 = vmatpush.msra.mxu0 0.0
    %957 = vmatpush.msra.mxu0 0.0
    %958 = vmatpush.msra.mxu0 0.0
    %959 = vmatpush.msra.mxu0 0.0
    %960 = vmatpush.msra.mxu0 0.0
    %961 = vmatpush.msra.mxu0 0.0
    %962 = vmatpush.msra.mxu0 0.0
    %963 = vmatpush.msra.mxu0 0.0
    %964 = vmatpush.msra.mxu0 0.0
    %965 = vmatpush.msra.mxu0 0.0
    %966 = vmatpush.msra.mxu0 0.0
    %967 = vmatpush.msra.mxu0 %v100
    %968 = vmatpush.msra.mxu0 %v99
    %969 = vmatpush.msra.mxu0 %v98
    %970 = vmatpush.msra.mxu0 %v97
    %971 = vmatmul.f32.gmra.mxu0 %v911
    %v972 = vpop.f32.mrf.mxu0
    %v973 = vadd.f32 0.0, %v972
    %974 = vdwg.mxu0
    %v976 = vrot.slane %v973, 2
    %v978 = vadd.f32 %v95, %v976
    %v979 = vmul.f32 %v978, 0.5
    %v980 = vtanh.pop %v979
    %v981 = vadd.f32 %v980, 1.0
    %v982 = vmul.f32 %v981, 0.5
    %v983 = vtanh.pop %v978
    %v985 = vrot.slane %v875, 6
    %v987 = vmul.f32 %v982, %v985
    %989 = vrot.lane.b32.xlu0 %v983, 32
    %v990 = vpop.permute.xlu0 %989
    %v992 = vmul.f32 %v982, %v990
    %994 = vrot.lane.b32.xlu0 %v992, 32
    %v995 = vpop.permute.xlu0 %994
    %v997 = vadd.f32 %v987, %v995
    %v998 = vtanh.pop %v997
    %1000 = vrot.lane.b32.xlu0 %v998, 32
    %v1001 = vpop.permute.xlu0 %1000
    %v1003 = vmul.f32 %v982, %v1001
    %1005 = vrot.lane.b32.xlu0 %v954, 64
    %v1006 = vpop.permute.xlu0 %1005
    %v1007 = vsel %vm113, %v1006, 0
    %1009 = vmatpush.msra.mxu0 0.0
    %1010 = vmatpush.msra.mxu0 0.0
    %1011 = vmatpush.msra.mxu0 0.0
    %1012 = vmatpush.msra.mxu0 0.0
    %1013 = vmatpush.msra.mxu0 0.0
    %1014 = vmatpush.msra.mxu0 0.0
    %1015 = vmatpush.msra.mxu0 0.0
    %1016 = vmatpush.msra.mxu0 0.0
    %1017 = vmatpush.msra.mxu0 0.0
    %1018 = vmatpush.msra.mxu0 0.0
    %1019 = vmatpush.msra.mxu0 0.0
    %1020 = vmatpush.msra.mxu0 0.0
    %1021 = vmatpush.msra.mxu0 %v108
    %1022 = vmatpush.msra.mxu0 %v107
    %1023 = vmatpush.msra.mxu0 %v106
    %1024 = vmatpush.msra.mxu0 %v105
    %1025 = vmatmul.f32.gmra.mxu0 %v1007
    %v1026 = vpop.f32.mrf.mxu0
    %v1027 = vadd.f32 %v111, %v1026
    %1028 = vdwg.mxu0
    %v1030 = vrot.slane %v1003, 6
    %1031 = vrot.lane.b32.xlu0 %v1030, 64
    %v1032 = vpop.permute.xlu0 %1031
    %v1033 = vsel %vm113, %v1032, 0
    %1035 = vmatpush.msra.mxu0 0.0
    %1036 = vmatpush.msra.mxu0 0.0
    %1037 = vmatpush.msra.mxu0 0.0
    %1038 = vmatpush.msra.mxu0 0.0
    %1039 = vmatpush.msra.mxu0 0.0
    %1040 = vmatpush.msra.mxu0 0.0
    %1041 = vmatpush.msra.mxu0 0.0
    %1042 = vmatpush.msra.mxu0 0.0
    %1043 = vmatpush.msra.mxu0 0.0
    %1044 = vmatpush.msra.mxu0 0.0
    %1045 = vmatpush.msra.mxu0 0.0
    %1046 = vmatpush.msra.mxu0 0.0
    %1047 = vmatpush.msra.mxu0 %v104
    %1048 = vmatpush.msra.mxu0 %v103
    %1049 = vmatpush.msra.mxu0 %v102
    %1050 = vmatpush.msra.mxu0 %v101
    %1051 = vmatmul.f32.gmra.mxu0 %v1033
    %v1052 = vpop.f32.mrf.mxu0
    %v1053 = vadd.f32 %v1027, %v1052
    %1054 = vdwg.mxu0
    %v1055 = vmul.f32 %v1053, 0.5
    %v1056 = vtanh.pop %v1055
    %v1057 = vadd.f32 %v1056, 1.0
    %v1058 = vmul.f32 %v1057, 0.5
    %v1059 = vtanh.pop %v1053
    %v1060 = vmul.f32 %v1058, %v948
    %1062 = vrot.lane.b32.xlu0 %v1059, 32
    %v1063 = vpop.permute.xlu0 %1062
    %v1065 = vmul.f32 %v1058, %v1063
    %1067 = vrot.lane.b32.xlu0 %v1065, 32
    %v1068 = vpop.permute.xlu0 %1067
    %v1070 = vadd.f32 %v1060, %v1068
    %v1071 = vtanh.pop %v1070
    %1073 = vrot.lane.b32.xlu0 %v1071, 32
    %v1074 = vpop.permute.xlu0 %1073
    %v1076 = vmul.f32 %v1058, %v1074
    %v1077 = vld [vmem:[%s7] sm:$0xff]
    %v1078 = vld [vmem:[%s7 + $0x8] sm:$0xff]
    %v1079 = vld [vmem:[%s7 + $0x10] sm:$0xff]
    %v1080 = vld [vmem:[%s7 + $0x18] sm:$0xff]
    %v1081 = vld [vmem:[%s8] sm:$0x1]
    %v1083 = vperm.slane %v1081, 0
    %1086 = vrot.lane.b32.xlu0 %v1076, 64
    %v1087 = vpop.permute.xlu0 %1086
    %v1088 = vsel %vm113, %v1087, 0
    %1090 = vmatpush.msra.mxu0 0.0
    %1091 = vmatpush.msra.mxu0 0.0
    %1092 = vmatpush.msra.mxu0 0.0
    %1093 = vmatpush.msra.mxu0 0.0
    %1094 = vmatpush.msra.mxu0 0.0
    %1095 = vmatpush.msra.mxu0 0.0
    %1096 = vmatpush.msra.mxu0 0.0
    %1097 = vmatpush.msra.mxu0 0.0
    %1098 = vmatpush.msra.mxu0 0.0
    %1099 = vmatpush.msra.mxu0 0.0
    %1100 = vmatpush.msra.mxu0 0.0
    %1101 = vmatpush.msra.mxu0 0.0
    %1102 = vmatpush.msra.mxu0 %v1080
    %1103 = vmatpush.msra.mxu0 %v1079
    %1104 = vmatpush.msra.mxu0 %v1078
    %1105 = vmatpush.msra.mxu0 %v1077
    %1106 = vmatmul.f32.gmra.mxu0 %v1088
    %v1107 = vpop.f32.mrf.mxu0
    %v1108 = vadd.f32 %v1083, %v1107
    %1109 = vdwg.mxu0
    %v1110 = vld [vmem:[%s9] sm:$0xff]
    %v1111 = vld [vmem:[%s9 + $0x8] sm:$0xff]
    %v1112 = vld [vmem:[#allocation2] sm:$0x1]
    %v1114 = vperm.slane %v1112, 0
    %vm1116 = vcmask 130048
    %v1118 = vsel %vm1116, %v1108, 0
    %1120 = vmatpush.msra.mxu0 0.0
    %1121 = vmatpush.msra.mxu0 0.0
    %1122 = vmatpush.msra.mxu0 0.0
    %1123 = vmatpush.msra.mxu0 0.0
    %1124 = vmatpush.msra.mxu0 0.0
    %1125 = vmatpush.msra.mxu0 0.0
    %1126 = vmatpush.msra.mxu0 0.0
    %1127 = vmatpush.msra.mxu0 0.0
    %1128 = vmatpush.msra.mxu0 0.0
    %1129 = vmatpush.msra.mxu0 0.0
    %1130 = vmatpush.msra.mxu0 0.0
    %1131 = vmatpush.msra.mxu0 0.0
    %1132 = vmatpush.msra.mxu0 0.0
    %1133 = vmatpush.msra.mxu0 0.0
    %1134 = vmatpush.msra.mxu0 %v1111
    %1135 = vmatpush.msra.mxu0 %v1110
    %1136 = vmatmul.f32.gmra.mxu0 %v1118
    %v1137 = vpop.f32.mrf.mxu0
    %v1138 = vadd.f32 %v1114, %v1137
    %1139 = vdwg.mxu0
    %vm1140 = vcmask 1024
    %1141 = vst.msk [vmem:[%s11] sm:$0x3] %vm1140, %v1138
    // Predicated region
    $region50: #{tpu_custom_call.1} parent=1 // pred_check
      _
    $region51: #{tpu_custom_call.1} parent=1 // pred_check_branch
      %1143 = sbr.rel (0) target = $region53
    $region52: #{tpu_custom_call.1} parent=1 // pred_region
      _
    $region53: #{tpu_custom_call.1} parent=1 // pred_fallthru
      _
    // Predicated region
    $region54: #{tpu_custom_call.1} parent=1 // pred_check
      _
    $region55: #{tpu_custom_call.1} parent=1 // pred_check_branch
      %1145 = sbr.rel (0) target = $region57
    $region56: #{tpu_custom_call.1} parent=1 // pred_region
      _
    $region57: #{tpu_custom_call.1} parent=1 // pred_fallthru
      _
    %1146 = vsyncpa [#allocation4], 1

</llo_original>
